<compile_context>
chip_gen: v7x
topology: tpu7x:2x2x1
jax: 0.10.0
libtpu: 0.0.40
codegen_flags: <defaults>
</compile_context>

<pallas_src>
import jax
import jax.numpy as jnp
import numpy as np
from jax.experimental import pallas as pl
from jax.experimental.pallas import tpu as pltpu

BN_EPS = 1e-5
TILE_M = 512                            # lane-dim tile for the gridded path
_VMEM_LIMIT = 32 * 1024 * 1024          # safe on v5e/v6e (128 MiB) and v7x (64 MiB)
_FUSED_VMEM_BUDGET = 20 * 1024 * 1024   # headroom under _VMEM_LIMIT for the
                                        # single-call (whole block in VMEM) path


# --------------------------------------------------------------------------
# Pallas kernels
# --------------------------------------------------------------------------
def _conv_bn_relu_kernel(p_ref, w_ref, g_ref, b_ref, o_ref):
    # (OC, K) @ (K, M) on the MXU (bf16 in, f32 acc), training-mode BatchNorm
    # over the M = batch*spatial lanes (biased variance, eps=1e-5), then ReLU.
    acc = jnp.dot(w_ref[...], p_ref[...], preferred_element_type=jnp.float32)
    mean = jnp.mean(acc, axis=1, keepdims=True)
    var = jnp.mean(jnp.square(acc - mean), axis=1, keepdims=True)
    scale = jax.lax.rsqrt(var + BN_EPS) * g_ref[...]
    o_ref[...] = jnp.maximum((acc - mean) * scale + b_ref[...], 0.0)


def _conv_bn_relu_pool_kernel(p_ref, w_ref, g_ref, b_ref, pm_ref, o_ref):
    # Same as above, with the AdaptiveAvgPool3d((1,1,1)) epilogue fused in as a
    # matmul against a block-diagonal (M, B) mean matrix -> (OC, B); the full
    # activation never leaves VMEM.
    acc = jnp.dot(w_ref[...], p_ref[...], preferred_element_type=jnp.float32)
    mean = jnp.mean(acc, axis=1, keepdims=True)
    var = jnp.mean(jnp.square(acc - mean), axis=1, keepdims=True)
    scale = jax.lax.rsqrt(var + BN_EPS) * g_ref[...]
    y = jnp.maximum((acc - mean) * scale + b_ref[...], 0.0)
    o_ref[...] = jnp.dot(y, pm_ref[...], preferred_element_type=jnp.float32)


def _conv_stats_kernel(p_ref, w_ref, raw_ref, sum_ref, sq_ref):
    # Tiled path, pass 1: matmul one (OC, TILE_M) tile, store the raw conv
    # result, accumulate per-channel sum / sum-of-squares into accumulator
    # outputs whose block index is constant across the M axis (stay resident).
    m = pl.program_id(0)

    @pl.when(m == 0)
    def _():
        sum_ref[...] = jnp.zeros_like(sum_ref)
        sq_ref[...] = jnp.zeros_like(sq_ref)

    acc = jnp.dot(w_ref[...], p_ref[...], preferred_element_type=jnp.float32)
    raw_ref[...] = acc
    sum_ref[...] += jnp.sum(acc, axis=1, keepdims=True)
    sq_ref[...] += jnp.sum(acc * acc, axis=1, keepdims=True)


def _bn_relu_kernel(raw_ref, scale_ref, shift_ref, o_ref):
    # Tiled path, pass 2: lane-dense per-channel scale/shift + ReLU per M tile.
    o_ref[...] = jnp.maximum(raw_ref[...] * scale_ref[...] + shift_ref[...], 0.0)


def _vmem_specs(n):
    return [pl.BlockSpec(memory_space=pltpu.MemorySpace.VMEM) for _ in range(n)]


# --------------------------------------------------------------------------
# Conv block wrappers (im2col glue + Pallas kernels)
# --------------------------------------------------------------------------
def _im2col(a):
    """a: (C, B, D, H, W) -> bf16 patches (K=C*27, M=B*Do*Ho*Wo), (Do, Ho, Wo).

    K is ordered (C-major, tap-minor) to match the PyTorch (OC, C, 3, 3, 3)
    weight flatten; M is batch-major so the pooling matrix is block diagonal.
    """
    C, B, D, H, W = a.shape
    Do, Ho, Wo = (D + 1) // 2, (H + 1) // 2, (W + 1) // 2
    ap = jnp.pad(a, ((0, 0), (0, 0), (1, 1), (1, 1), (1, 1)))
    taps = []
    for kd in range(3):
        for kh in range(3):
            for kw in range(3):
                taps.append(ap[:, :,
                               kd:kd + 2 * Do - 1:2,
                               kh:kh + 2 * Ho - 1:2,
                               kw:kw + 2 * Wo - 1:2])
    p = jnp.stack(taps, axis=1)                       # (C, 27, B, Do, Ho, Wo)
    K = C * 27
    M = B * Do * Ho * Wo
    return p.reshape(K, M).astype(jnp.bfloat16), (Do, Ho, Wo)


def _prep(a, w, gamma, beta):
    C = a.shape[0]
    OC = w.shape[0]
    patches, dims = _im2col(a)
    w2d = w.reshape(OC, C * 27).astype(jnp.bfloat16)  # (OC, K), no transpose
    g = gamma.reshape(OC, 1).astype(jnp.float32)
    b = beta.reshape(OC, 1).astype(jnp.float32)
    return patches, w2d, g, b, dims


def _fused_vmem_bytes(K, M, OC):
    # patches(bf16) + weights(bf16) + f32 acc + centered temp + f32 output
    return K * M * 2 + OC * K * 2 + 3 * OC * M * 4


def _conv_bn_relu_fused(patches, w2d, g, b):
    """Single-call conv + BN + ReLU with the whole block resident in VMEM."""
    OC = w2d.shape[0]
    M = patches.shape[1]
    return pl.pallas_call(
        _conv_bn_relu_kernel,
        out_shape=jax.ShapeDtypeStruct((OC, M), jnp.float32),
        in_specs=_vmem_specs(4),
        out_specs=pl.BlockSpec(memory_space=pltpu.MemorySpace.VMEM),
        compiler_params=pltpu.CompilerParams(vmem_limit_bytes=_VMEM_LIMIT),
    )(patches, w2d, g, b)


def _conv_bn_relu_tiled(patches, w2d, g, b, m_true):
    """Gridded two-pass conv + BN + ReLU for large M. Returns (OC, M) f32."""
    K, M = patches.shape
    OC = w2d.shape[0]
    Mp = ((M + TILE_M - 1) // TILE_M) * TILE_M
    if Mp != M:
        # zero columns contribute nothing to sum / sum-of-squares; the stats
        # below divide by the true element count m_true.
        patches = jnp.pad(patches, ((0, 0), (0, Mp - M)))
    n_tiles = Mp // TILE_M

    raw, csum, csq = pl.pallas_call(
        _conv_stats_kernel,
        out_shape=(jax.ShapeDtypeStruct((OC, Mp), jnp.float32),
                   jax.ShapeDtypeStruct((OC, 1), jnp.float32),
                   jax.ShapeDtypeStruct((OC, 1), jnp.float32)),
        grid_spec=pltpu.PrefetchScalarGridSpec(
            num_scalar_prefetch=0,
            grid=(n_tiles,),
            in_specs=[pl.BlockSpec((K, TILE_M), lambda m: (0, m)),
                      pl.BlockSpec((OC, K), lambda m: (0, 0))],
            out_specs=[pl.BlockSpec((OC, TILE_M), lambda m: (0, m)),
                       pl.BlockSpec((OC, 1), lambda m: (0, 0)),
                       pl.BlockSpec((OC, 1), lambda m: (0, 0))]),
        compiler_params=pltpu.CompilerParams(
            dimension_semantics=("arbitrary",),       # BN stat accumulation axis
            vmem_limit_bytes=_VMEM_LIMIT),
    )(patches, w2d)

    count = jnp.float32(m_true)
    mean = csum / count
    var = jnp.maximum(csq / count - mean * mean, 0.0)  # biased variance
    scale = g * jax.lax.rsqrt(var + BN_EPS)
    shift = b - mean * scale

    out = pl.pallas_call(
        _bn_relu_kernel,
        out_shape=jax.ShapeDtypeStruct((OC, Mp), jnp.float32),
        grid_spec=pltpu.PrefetchScalarGridSpec(
            num_scalar_prefetch=0,
            grid=(n_tiles,),
            in_specs=[pl.BlockSpec((OC, TILE_M), lambda m: (0, m)),
                      pl.BlockSpec((OC, 1), lambda m: (0, 0)),
                      pl.BlockSpec((OC, 1), lambda m: (0, 0))],
            out_specs=pl.BlockSpec((OC, TILE_M), lambda m: (0, m))),
        compiler_params=pltpu.CompilerParams(
            dimension_semantics=("parallel",),        # v7x: 2 TCs split M tiles
            vmem_limit_bytes=_VMEM_LIMIT),
    )(raw, scale, shift)
    return out[:, :M] if Mp != M else out


def conv_block(a, w, gamma, beta):
    """Conv3d(k=3,s=2,p=1,bias=False) + BN (batch stats) + ReLU.

    a: (C, B, D, H, W) -> (OC, B, Do, Ho, Wo) with Do = floor((D-1)/2)+1 etc.
    """
    B = a.shape[1]
    OC = w.shape[0]
    patches, w2d, g, b, (Do, Ho, Wo) = _prep(a, w, gamma, beta)
    K, M = patches.shape
    if _fused_vmem_bytes(K, M, OC) > _FUSED_VMEM_BUDGET:
        out = _conv_bn_relu_tiled(patches, w2d, g, b, M)
    else:
        out = _conv_bn_relu_fused(patches, w2d, g, b)
    return out.reshape(OC, B, Do, Ho, Wo)


def conv_block_pooled(a, w, gamma, beta):
    """conv_block followed by fused AdaptiveAvgPool3d((1,1,1)); returns (B, OC)."""
    B = a.shape[1]
    OC = w.shape[0]
    patches, w2d, g, b, (Do, Ho, Wo) = _prep(a, w, gamma, beta)
    K, M = patches.shape
    if _fused_vmem_bytes(K, M, OC) > _FUSED_VMEM_BUDGET:
        act = _conv_bn_relu_tiled(patches, w2d, g, b, M).reshape(OC, B, Do, Ho, Wo)
        return act.mean(axis=(2, 3, 4)).T
    spatial = Do * Ho * Wo
    pm = jnp.repeat(jnp.eye(B, dtype=jnp.float32), spatial, axis=0) / spatial
    pooled = pl.pallas_call(
        _conv_bn_relu_pool_kernel,
        out_shape=jax.ShapeDtypeStruct((OC, B), jnp.float32),
        in_specs=_vmem_specs(5),
        out_specs=pl.BlockSpec(memory_space=pltpu.MemorySpace.VMEM),
        compiler_params=pltpu.CompilerParams(vmem_limit_bytes=_VMEM_LIMIT),
    )(patches, w2d, g, b, pm)
    return pooled.T


def avg_pool_2(a):
    # nn.AvgPool3d(kernel_size=2, stride=2) on (C, B, D, H, W), even spatial dims.
    C, B, D, H, W = a.shape
    return a.reshape(C, B, D // 2, 2, H // 2, 2, W // 2, 2).mean(axis=(3, 5, 7))


# --------------------------------------------------------------------------
# Parameter construction (deterministic, mirrors MultiCubeNet.__init__)
# --------------------------------------------------------------------------
def init_params(key, in_channels, output_channels, num_clf_classes, num_reg_tasks):
    layers = len(output_channels)
    params = {"layers": []}
    for i in range(layers):
        former = 0 if i == 0 else output_channels[i - 1]
        start_in = in_channels + former
        blocks = []
        for oc in output_channels[i:]:
            key, k1 = jax.random.split(key)
            fan_out = oc * 27  # kaiming_normal, mode='fan_out', relu
            w = jax.random.normal(k1, (oc, start_in, 3, 3, 3), jnp.float32) * (
                (2.0 / fan_out) ** 0.5
            )
            gamma = jnp.ones((oc,), jnp.float32)   # BN weight init = 1
            beta = jnp.zeros((oc,), jnp.float32)   # BN bias init = 0
            blocks.append((w, gamma, beta))
            start_in = oc
        params["layers"].append(blocks)

    feat = output_channels[-1] * layers
    heads = []
    for nc in list(num_clf_classes) + [1] * num_reg_tasks:
        key, k1 = jax.random.split(key)
        bound = 1.0 / (feat ** 0.5)
        w = jax.random.uniform(k1, (feat, nc), jnp.float32, -bound, bound)
        b = jnp.zeros((nc,), jnp.float32)          # Linear bias init = 0
        heads.append((w, b))
    params["heads"] = heads
    return params


# --------------------------------------------------------------------------
# Forward pass (mirrors MultiCubeNet.forward)
# --------------------------------------------------------------------------
def multicubenet_forward(x, params):
    """x: NCDHW (B, C, D, H, W). Returns [clf_t1, clf_t2, clf_t3, reg_t]."""
    a = jnp.transpose(x, (1, 0, 2, 3, 4))          # channels-major (C, B, D, H, W)
    layer_params = params["layers"]
    n_layers = len(layer_params)

    outs = []
    former = None
    for i, blocks in enumerate(layer_params):
        if i == 0:
            inp = a
        else:
            a = avg_pool_2(a)
            inp = jnp.concatenate([a, former], axis=0)   # channel concat
        if len(blocks) == 1:
            if i == n_layers - 1:
                outs.append(conv_block_pooled(inp, *blocks[0]))
            else:
                former = conv_block(inp, *blocks[0])
                outs.append(former.mean(axis=(2, 3, 4)).T)
        else:
            former = conv_block(inp, *blocks[0])
            y = former
            for blk in blocks[1:-1]:
                y = conv_block(y, *blk)
            # last block of the chain emits only the pooled (B, OC) features
            outs.append(conv_block_pooled(y, *blocks[-1]))

    feats = jnp.concatenate(outs, axis=1)          # (B, layers * output_channels[-1])

    # Classifier / regression heads: tiny (B, 10) matmul — left to XLA (a
    # standalone sub-(8,128) pallas_call buys nothing here).
    ws = jnp.concatenate([w for w, _ in params["heads"]], axis=1)
    bs = jnp.concatenate([b for _, b in params["heads"]], axis=0)
    all_out = feats @ ws + bs

    head_outs, off = [], 0
    for w, _ in params["heads"]:
        n = w.shape[1]
        head_outs.append(all_out[:, off:off + n])
        off += n
    return head_outs


# --------------------------------------------------------------------------
# XLA reference for one conv block (used only for the self-check in __main__)
# --------------------------------------------------------------------------
def _xla_conv_bn_relu_ref(x_ncdhw, w, gamma, beta):
    y = jax.lax.conv_general_dilated(
        x_ncdhw.astype(jnp.bfloat16), w.astype(jnp.bfloat16),
        window_strides=(2, 2, 2), padding=((1, 1), (1, 1), (1, 1)),
        dimension_numbers=("NCDHW", "OIDHW", "NCDHW"),
        preferred_element_type=jnp.float32)
    mean = y.mean(axis=(0, 2, 3, 4), keepdims=True)
    var = jnp.square(y - mean).mean(axis=(0, 2, 3, 4), keepdims=True)
    g = gamma.reshape(1, -1, 1, 1, 1)
    b = beta.reshape(1, -1, 1, 1, 1)
    return jnp.maximum((y - mean) * jax.lax.rsqrt(var + BN_EPS) * g + b, 0.0)


# --------------------------------------------------------------------------
if __name__ == "__main__":
    output_channels = [4, 4, 8, 8, 8]   # 5 layers (module hardcodes l1..l5)
    num_clf_classes = [2, 3, 4]         # module hardcodes clf_t1..clf_t3
    num_reg_tasks = 1                   # module hardcodes reg_t

    key = jax.random.PRNGKey(0)
    kx, kp = jax.random.split(key)
    x = jax.random.normal(kx, (2, 3, 16, 16, 16), jnp.float32)  # NCDHW

    params = init_params(kp, 3, output_channels, num_clf_classes, num_reg_tasks)
    fwd = jax.jit(multicubenet_forward)
    outs = jax.block_until_ready(fwd(x, params))

    expected_shapes = [(2, 2), (2, 3), (2, 4), (2, 1)]
    assert [tuple(o.shape) for o in outs] == expected_shapes, \
        [tuple(o.shape) for o in outs]
    assert all(bool(jnp.all(jnp.isfinite(o))) for o in outs)

    # ---- self-check 1: Pallas conv+BN+ReLU block vs XLA conv reference -----
    w0, g0, b0 = params["layers"][0][0]
    a0 = jnp.transpose(x, (1, 0, 2, 3, 4))
    blk_pallas = jnp.transpose(conv_block(a0, w0, g0, b0), (1, 0, 2, 3, 4))
    blk_ref = _xla_conv_bn_relu_ref(x, w0, g0, b0)
    np.testing.assert_allclose(np.asarray(blk_pallas), np.asarray(blk_ref),
                               rtol=1e-2, atol=1e-2)

    # ---- self-check 2: gridded two-pass path vs fused single-call path -----
    patches, w2d, gg, bb, _ = _prep(a0, w0, g0, b0)
    tiled = _conv_bn_relu_tiled(patches, w2d, gg, bb, patches.shape[1])
    fused = _conv_bn_relu_fused(patches, w2d, gg, bb)
    np.testing.assert_allclose(np.asarray(tiled), np.asarray(fused),
                               rtol=2e-3, atol=2e-3)

    print("KERNEL_OK")
</pallas_src>

<mosaic_0001>
module attributes {stable_mosaic.version = 11 : i64} {
  func.func @_conv_bn_relu_kernel(%arg0: memref<81x1024xbf16, #tpu.memory_space<vmem>>, %arg1: memref<4x81xbf16, #tpu.memory_space<vmem>>, %arg2: memref<4x1xf32, #tpu.memory_space<vmem>>, %arg3: memref<4x1xf32, #tpu.memory_space<vmem>>, %arg4: memref<4x1024xf32, #tpu.memory_space<vmem>>) attributes {dimension_semantics = [], scalar_prefetch = 0 : i64, scratch_operands = 0 : i64, tpu.core_type = #tpu.core_type<tc>} {
    %c0 = arith.constant 0 : index
    %c0_0 = arith.constant 0 : index
    %0 = vector.load %arg1[%c0, %c0_0] : memref<4x81xbf16, #tpu.memory_space<vmem>>, vector<4x81xbf16>
    %c0_1 = arith.constant 0 : index
    %c0_2 = arith.constant 0 : index
    %1 = vector.load %arg0[%c0_1, %c0_2] : memref<81x1024xbf16, #tpu.memory_space<vmem>>, vector<81x1024xbf16>
    %cst = arith.constant dense<0.000000e+00> : vector<4x1024xf32>
    %2 = tpu.matmul %0, %1, %cst {dimension_numbers = #tpu.dot_dimension_numbers<[1], [0], [0], [1], [0, 0, 1, 1], [], []>} : vector<4x81xbf16>, vector<81x1024xbf16>, vector<4x1024xf32> -> vector<4x1024xf32>
    %cst_3 = arith.constant dense<0.000000e+00> : vector<4xf32>
    %3 = vector.multi_reduction <add>, %2, %cst_3 [1] : vector<4x1024xf32> to vector<4xf32>
    %4 = vector.shape_cast %3 : vector<4xf32> to vector<4x1xf32>
    %cst_4 = arith.constant 1.024000e+03 : f32
    %5 = vector.broadcast %cst_4 : f32 to vector<4x1xf32>
    %6 = arith.divf %4, %5 : vector<4x1xf32>
    %7 = vector.broadcast %6 : vector<4x1xf32> to vector<4x1024xf32>
    %8 = arith.subf %2, %7 : vector<4x1024xf32>
    %9 = arith.mulf %8, %8 : vector<4x1024xf32>
    %cst_5 = arith.constant dense<0.000000e+00> : vector<4xf32>
    %10 = vector.multi_reduction <add>, %9, %cst_5 [1] : vector<4x1024xf32> to vector<4xf32>
    %11 = vector.shape_cast %10 : vector<4xf32> to vector<4x1xf32>
    %cst_6 = arith.constant 1.024000e+03 : f32
    %12 = vector.broadcast %cst_6 : f32 to vector<4x1xf32>
    %13 = arith.divf %11, %12 : vector<4x1xf32>
    %cst_7 = arith.constant 9.99999974E-6 : f32
    %14 = vector.broadcast %cst_7 : f32 to vector<4x1xf32>
    %15 = arith.addf %13, %14 : vector<4x1xf32>
    %16 = math.rsqrt %15 : vector<4x1xf32>
    %c0_8 = arith.constant 0 : index
    %c0_9 = arith.constant 0 : index
    %17 = vector.load %arg2[%c0_8, %c0_9] : memref<4x1xf32, #tpu.memory_space<vmem>>, vector<4x1xf32>
    %18 = arith.mulf %16, %17 : vector<4x1xf32>
    %19 = vector.broadcast %6 : vector<4x1xf32> to vector<4x1024xf32>
    %20 = arith.subf %2, %19 : vector<4x1024xf32>
    %21 = vector.broadcast %18 : vector<4x1xf32> to vector<4x1024xf32>
    %22 = arith.mulf %20, %21 : vector<4x1024xf32>
    %c0_10 = arith.constant 0 : index
    %c0_11 = arith.constant 0 : index
    %23 = vector.load %arg3[%c0_10, %c0_11] : memref<4x1xf32, #tpu.memory_space<vmem>>, vector<4x1xf32>
    %24 = vector.broadcast %23 : vector<4x1xf32> to vector<4x1024xf32>
    %25 = arith.addf %22, %24 : vector<4x1024xf32>
    %cst_12 = arith.constant 0.000000e+00 : f32
    %26 = vector.broadcast %cst_12 : f32 to vector<4x1024xf32>
    %27 = arith.maximumf %25, %26 : vector<4x1024xf32>
    %c0_13 = arith.constant 0 : index
    %c0_14 = arith.constant 0 : index
    %28 = vector.load %arg4[%c0_13, %c0_14] : memref<4x1024xf32, #tpu.memory_space<vmem>>, vector<4x1024xf32>
    tpu.vector_store %arg4[%c0_13, %c0_14], %27 {strides = array<i32>} : memref<4x1024xf32, #tpu.memory_space<vmem>>, vector<4x1024xf32>,
    return
  }
}

module attributes {stable_mosaic.version = 11 : i64} {
  func.func @_conv_bn_relu_kernel(%arg0: memref<189x128xbf16, #tpu.memory_space<vmem>>, %arg1: memref<4x189xbf16, #tpu.memory_space<vmem>>, %arg2: memref<4x1xf32, #tpu.memory_space<vmem>>, %arg3: memref<4x1xf32, #tpu.memory_space<vmem>>, %arg4: memref<4x128xf32, #tpu.memory_space<vmem>>) attributes {dimension_semantics = [], scalar_prefetch = 0 : i64, scratch_operands = 0 : i64, tpu.core_type = #tpu.core_type<tc>} {
    %c0 = arith.constant 0 : index
    %c0_0 = arith.constant 0 : index
    %0 = vector.load %arg1[%c0, %c0_0] : memref<4x189xbf16, #tpu.memory_space<vmem>>, vector<4x189xbf16>
    %c0_1 = arith.constant 0 : index
    %c0_2 = arith.constant 0 : index
    %1 = vector.load %arg0[%c0_1, %c0_2] : memref<189x128xbf16, #tpu.memory_space<vmem>>, vector<189x128xbf16>
    %cst = arith.constant dense<0.000000e+00> : vector<4x128xf32>
    %2 = tpu.matmul %0, %1, %cst {dimension_numbers = #tpu.dot_dimension_numbers<[1], [0], [0], [1], [0, 0, 1, 1], [], []>} : vector<4x189xbf16>, vector<189x128xbf16>, vector<4x128xf32> -> vector<4x128xf32>
    %cst_3 = arith.constant dense<0.000000e+00> : vector<4xf32>
    %3 = vector.multi_reduction <add>, %2, %cst_3 [1] : vector<4x128xf32> to vector<4xf32>
    %4 = vector.shape_cast %3 : vector<4xf32> to vector<4x1xf32>
    %cst_4 = arith.constant 1.280000e+02 : f32
    %5 = vector.broadcast %cst_4 : f32 to vector<4x1xf32>
    %6 = arith.divf %4, %5 : vector<4x1xf32>
    %7 = vector.broadcast %6 : vector<4x1xf32> to vector<4x128xf32>
    %8 = arith.subf %2, %7 : vector<4x128xf32>
    %9 = arith.mulf %8, %8 : vector<4x128xf32>
    %cst_5 = arith.constant dense<0.000000e+00> : vector<4xf32>
    %10 = vector.multi_reduction <add>, %9, %cst_5 [1] : vector<4x128xf32> to vector<4xf32>
    %11 = vector.shape_cast %10 : vector<4xf32> to vector<4x1xf32>
    %cst_6 = arith.constant 1.280000e+02 : f32
    %12 = vector.broadcast %cst_6 : f32 to vector<4x1xf32>
    %13 = arith.divf %11, %12 : vector<4x1xf32>
    %cst_7 = arith.constant 9.99999974E-6 : f32
    %14 = vector.broadcast %cst_7 : f32 to vector<4x1xf32>
    %15 = arith.addf %13, %14 : vector<4x1xf32>
    %16 = math.rsqrt %15 : vector<4x1xf32>
    %c0_8 = arith.constant 0 : index
    %c0_9 = arith.constant 0 : index
    %17 = vector.load %arg2[%c0_8, %c0_9] : memref<4x1xf32, #tpu.memory_space<vmem>>, vector<4x1xf32>
    %18 = arith.mulf %16, %17 : vector<4x1xf32>
    %19 = vector.broadcast %6 : vector<4x1xf32> to vector<4x128xf32>
    %20 = arith.subf %2, %19 : vector<4x128xf32>
    %21 = vector.broadcast %18 : vector<4x1xf32> to vector<4x128xf32>
    %22 = arith.mulf %20, %21 : vector<4x128xf32>
    %c0_10 = arith.constant 0 : index
    %c0_11 = arith.constant 0 : index
    %23 = vector.load %arg3[%c0_10, %c0_11] : memref<4x1xf32, #tpu.memory_space<vmem>>, vector<4x1xf32>
    %24 = vector.broadcast %23 : vector<4x1xf32> to vector<4x128xf32>
    %25 = arith.addf %22, %24 : vector<4x128xf32>
    %cst_12 = arith.constant 0.000000e+00 : f32
    %26 = vector.broadcast %cst_12 : f32 to vector<4x128xf32>
    %27 = arith.maximumf %25, %26 : vector<4x128xf32>
    %c0_13 = arith.constant 0 : index
    %c0_14 = arith.constant 0 : index
    %28 = vector.load %arg4[%c0_13, %c0_14] : memref<4x128xf32, #tpu.memory_space<vmem>>, vector<4x128xf32>
    tpu.vector_store %arg4[%c0_13, %c0_14], %27 {strides = array<i32>} : memref<4x128xf32, #tpu.memory_space<vmem>>, vector<4x128xf32>,
    return
  }
}

module attributes {stable_mosaic.version = 11 : i64} {
  func.func @_conv_bn_relu_kernel(%arg0: memref<189x16xbf16, #tpu.memory_space<vmem>>, %arg1: memref<8x189xbf16, #tpu.memory_space<vmem>>, %arg2: memref<8x1xf32, #tpu.memory_space<vmem>>, %arg3: memref<8x1xf32, #tpu.memory_space<vmem>>, %arg4: memref<8x16xf32, #tpu.memory_space<vmem>>) attributes {dimension_semantics = [], scalar_prefetch = 0 : i64, scratch_operands = 0 : i64, tpu.core_type = #tpu.core_type<tc>} {
    %c0 = arith.constant 0 : index
    %c0_0 = arith.constant 0 : index
    %0 = vector.load %arg1[%c0, %c0_0] : memref<8x189xbf16, #tpu.memory_space<vmem>>, vector<8x189xbf16>
    %c0_1 = arith.constant 0 : index
    %c0_2 = arith.constant 0 : index
    %1 = vector.load %arg0[%c0_1, %c0_2] : memref<189x16xbf16, #tpu.memory_space<vmem>>, vector<189x16xbf16>
    %cst = arith.constant dense<0.000000e+00> : vector<8x16xf32>
    %2 = tpu.matmul %0, %1, %cst {dimension_numbers = #tpu.dot_dimension_numbers<[1], [0], [0], [1], [0, 0, 1, 1], [], []>} : vector<8x189xbf16>, vector<189x16xbf16>, vector<8x16xf32> -> vector<8x16xf32>
    %cst_3 = arith.constant dense<0.000000e+00> : vector<8xf32>
    %3 = vector.multi_reduction <add>, %2, %cst_3 [1] : vector<8x16xf32> to vector<8xf32>
    %4 = vector.shape_cast %3 : vector<8xf32> to vector<8x1xf32>
    %cst_4 = arith.constant 1.600000e+01 : f32
    %5 = vector.broadcast %cst_4 : f32 to vector<8x1xf32>
    %6 = arith.divf %4, %5 : vector<8x1xf32>
    %7 = vector.broadcast %6 : vector<8x1xf32> to vector<8x16xf32>
    %8 = arith.subf %2, %7 : vector<8x16xf32>
    %9 = arith.mulf %8, %8 : vector<8x16xf32>
    %cst_5 = arith.constant dense<0.000000e+00> : vector<8xf32>
    %10 = vector.multi_reduction <add>, %9, %cst_5 [1] : vector<8x16xf32> to vector<8xf32>
    %11 = vector.shape_cast %10 : vector<8xf32> to vector<8x1xf32>
    %cst_6 = arith.constant 1.600000e+01 : f32
    %12 = vector.broadcast %cst_6 : f32 to vector<8x1xf32>
    %13 = arith.divf %11, %12 : vector<8x1xf32>
    %cst_7 = arith.constant 9.99999974E-6 : f32
    %14 = vector.broadcast %cst_7 : f32 to vector<8x1xf32>
    %15 = arith.addf %13, %14 : vector<8x1xf32>
    %16 = math.rsqrt %15 : vector<8x1xf32>
    %c0_8 = arith.constant 0 : index
    %c0_9 = arith.constant 0 : index
    %17 = vector.load %arg2[%c0_8, %c0_9] : memref<8x1xf32, #tpu.memory_space<vmem>>, vector<8x1xf32>
    %18 = arith.mulf %16, %17 : vector<8x1xf32>
    %19 = vector.broadcast %6 : vector<8x1xf32> to vector<8x16xf32>
    %20 = arith.subf %2, %19 : vector<8x16xf32>
    %21 = vector.broadcast %18 : vector<8x1xf32> to vector<8x16xf32>
    %22 = arith.mulf %20, %21 : vector<8x16xf32>
    %c0_10 = arith.constant 0 : index
    %c0_11 = arith.constant 0 : index
    %23 = vector.load %arg3[%c0_10, %c0_11] : memref<8x1xf32, #tpu.memory_space<vmem>>, vector<8x1xf32>
    %24 = vector.broadcast %23 : vector<8x1xf32> to vector<8x16xf32>
    %25 = arith.addf %22, %24 : vector<8x16xf32>
    %cst_12 = arith.constant 0.000000e+00 : f32
    %26 = vector.broadcast %cst_12 : f32 to vector<8x16xf32>
    %27 = arith.maximumf %25, %26 : vector<8x16xf32>
    %c0_13 = arith.constant 0 : index
    %c0_14 = arith.constant 0 : index
    %28 = vector.load %arg4[%c0_13, %c0_14] : memref<8x16xf32, #tpu.memory_space<vmem>>, vector<8x16xf32>
    tpu.vector_store %arg4[%c0_13, %c0_14], %27 {strides = array<i32>} : memref<8x16xf32, #tpu.memory_space<vmem>>, vector<8x16xf32>,
    return
  }
}

module attributes {stable_mosaic.version = 11 : i64} {
  func.func @_conv_bn_relu_kernel(%arg0: memref<297x2xbf16, #tpu.memory_space<vmem>>, %arg1: memref<8x297xbf16, #tpu.memory_space<vmem>>, %arg2: memref<8x1xf32, #tpu.memory_space<vmem>>, %arg3: memref<8x1xf32, #tpu.memory_space<vmem>>, %arg4: memref<8x2xf32, #tpu.memory_space<vmem>>) attributes {dimension_semantics = [], scalar_prefetch = 0 : i64, scratch_operands = 0 : i64, tpu.core_type = #tpu.core_type<tc>} {
    %c0 = arith.constant 0 : index
    %c0_0 = arith.constant 0 : index
    %0 = vector.load %arg1[%c0, %c0_0] : memref<8x297xbf16, #tpu.memory_space<vmem>>, vector<8x297xbf16>
    %c0_1 = arith.constant 0 : index
    %c0_2 = arith.constant 0 : index
    %1 = vector.load %arg0[%c0_1, %c0_2] : memref<297x2xbf16, #tpu.memory_space<vmem>>, vector<297x2xbf16>
    %cst = arith.constant dense<0.000000e+00> : vector<8x2xf32>
    %2 = tpu.matmul %0, %1, %cst {dimension_numbers = #tpu.dot_dimension_numbers<[1], [0], [0], [1], [0, 0, 1, 1], [], []>} : vector<8x297xbf16>, vector<297x2xbf16>, vector<8x2xf32> -> vector<8x2xf32>
    %cst_3 = arith.constant dense<0.000000e+00> : vector<8xf32>
    %3 = vector.multi_reduction <add>, %2, %cst_3 [1] : vector<8x2xf32> to vector<8xf32>
    %4 = vector.shape_cast %3 : vector<8xf32> to vector<8x1xf32>
    %cst_4 = arith.constant 2.000000e+00 : f32
    %5 = vector.broadcast %cst_4 : f32 to vector<8x1xf32>
    %6 = arith.divf %4, %5 : vector<8x1xf32>
    %7 = vector.broadcast %6 : vector<8x1xf32> to vector<8x2xf32>
    %8 = arith.subf %2, %7 : vector<8x2xf32>
    %9 = arith.mulf %8, %8 : vector<8x2xf32>
    %cst_5 = arith.constant dense<0.000000e+00> : vector<8xf32>
    %10 = vector.multi_reduction <add>, %9, %cst_5 [1] : vector<8x2xf32> to vector<8xf32>
    %11 = vector.shape_cast %10 : vector<8xf32> to vector<8x1xf32>
    %cst_6 = arith.constant 2.000000e+00 : f32
    %12 = vector.broadcast %cst_6 : f32 to vector<8x1xf32>
    %13 = arith.divf %11, %12 : vector<8x1xf32>
    %cst_7 = arith.constant 9.99999974E-6 : f32
    %14 = vector.broadcast %cst_7 : f32 to vector<8x1xf32>
    %15 = arith.addf %13, %14 : vector<8x1xf32>
    %16 = math.rsqrt %15 : vector<8x1xf32>
    %c0_8 = arith.constant 0 : index
    %c0_9 = arith.constant 0 : index
    %17 = vector.load %arg2[%c0_8, %c0_9] : memref<8x1xf32, #tpu.memory_space<vmem>>, vector<8x1xf32>
    %18 = arith.mulf %16, %17 : vector<8x1xf32>
    %19 = vector.broadcast %6 : vector<8x1xf32> to vector<8x2xf32>
    %20 = arith.subf %2, %19 : vector<8x2xf32>
    %21 = vector.broadcast %18 : vector<8x1xf32> to vector<8x2xf32>
    %22 = arith.mulf %20, %21 : vector<8x2xf32>
    %c0_10 = arith.constant 0 : index
    %c0_11 = arith.constant 0 : index
    %23 = vector.load %arg3[%c0_10, %c0_11] : memref<8x1xf32, #tpu.memory_space<vmem>>, vector<8x1xf32>
    %24 = vector.broadcast %23 : vector<8x1xf32> to vector<8x2xf32>
    %25 = arith.addf %22, %24 : vector<8x2xf32>
    %cst_12 = arith.constant 0.000000e+00 : f32
    %26 = vector.broadcast %cst_12 : f32 to vector<8x2xf32>
    %27 = arith.maximumf %25, %26 : vector<8x2xf32>
    %c0_13 = arith.constant 0 : index
    %c0_14 = arith.constant 0 : index
    %28 = vector.load %arg4[%c0_13, %c0_14] : memref<8x2xf32, #tpu.memory_space<vmem>>, vector<8x2xf32>
    tpu.vector_store %arg4[%c0_13, %c0_14], %27 {strides = array<i32>} : memref<8x2xf32, #tpu.memory_space<vmem>>, vector<8x2xf32>,
    return
  }
}

module attributes {stable_mosaic.version = 11 : i64} {
  func.func @_conv_bn_relu_pool_kernel(%arg0: memref<297x2xbf16, #tpu.memory_space<vmem>>, %arg1: memref<8x297xbf16, #tpu.memory_space<vmem>>, %arg2: memref<8x1xf32, #tpu.memory_space<vmem>>, %arg3: memref<8x1xf32, #tpu.memory_space<vmem>>, %arg4: memref<2x2xf32, #tpu.memory_space<vmem>>, %arg5: memref<8x2xf32, #tpu.memory_space<vmem>>) attributes {dimension_semantics = [], scalar_prefetch = 0 : i64, scratch_operands = 0 : i64, tpu.core_type = #tpu.core_type<tc>} {
    %c0 = arith.constant 0 : index
    %c0_0 = arith.constant 0 : index
    %0 = vector.load %arg1[%c0, %c0_0] : memref<8x297xbf16, #tpu.memory_space<vmem>>, vector<8x297xbf16>
    %c0_1 = arith.constant 0 : index
    %c0_2 = arith.constant 0 : index
    %1 = vector.load %arg0[%c0_1, %c0_2] : memref<297x2xbf16, #tpu.memory_space<vmem>>, vector<297x2xbf16>
    %cst = arith.constant dense<0.000000e+00> : vector<8x2xf32>
    %2 = tpu.matmul %0, %1, %cst {dimension_numbers = #tpu.dot_dimension_numbers<[1], [0], [0], [1], [0, 0, 1, 1], [], []>} : vector<8x297xbf16>, vector<297x2xbf16>, vector<8x2xf32> -> vector<8x2xf32>
    %cst_3 = arith.constant dense<0.000000e+00> : vector<8xf32>
    %3 = vector.multi_reduction <add>, %2, %cst_3 [1] : vector<8x2xf32> to vector<8xf32>
    %4 = vector.shape_cast %3 : vector<8xf32> to vector<8x1xf32>
    %cst_4 = arith.constant 2.000000e+00 : f32
    %5 = vector.broadcast %cst_4 : f32 to vector<8x1xf32>
    %6 = arith.divf %4, %5 : vector<8x1xf32>
    %7 = vector.broadcast %6 : vector<8x1xf32> to vector<8x2xf32>
    %8 = arith.subf %2, %7 : vector<8x2xf32>
    %9 = arith.mulf %8, %8 : vector<8x2xf32>
    %cst_5 = arith.constant dense<0.000000e+00> : vector<8xf32>
    %10 = vector.multi_reduction <add>, %9, %cst_5 [1] : vector<8x2xf32> to vector<8xf32>
    %11 = vector.shape_cast %10 : vector<8xf32> to vector<8x1xf32>
    %cst_6 = arith.constant 2.000000e+00 : f32
    %12 = vector.broadcast %cst_6 : f32 to vector<8x1xf32>
    %13 = arith.divf %11, %12 : vector<8x1xf32>
    %cst_7 = arith.constant 9.99999974E-6 : f32
    %14 = vector.broadcast %cst_7 : f32 to vector<8x1xf32>
    %15 = arith.addf %13, %14 : vector<8x1xf32>
    %16 = math.rsqrt %15 : vector<8x1xf32>
    %c0_8 = arith.constant 0 : index
    %c0_9 = arith.constant 0 : index
    %17 = vector.load %arg2[%c0_8, %c0_9] : memref<8x1xf32, #tpu.memory_space<vmem>>, vector<8x1xf32>
    %18 = arith.mulf %16, %17 : vector<8x1xf32>
    %19 = vector.broadcast %6 : vector<8x1xf32> to vector<8x2xf32>
    %20 = arith.subf %2, %19 : vector<8x2xf32>
    %21 = vector.broadcast %18 : vector<8x1xf32> to vector<8x2xf32>
    %22 = arith.mulf %20, %21 : vector<8x2xf32>
    %c0_10 = arith.constant 0 : index
    %c0_11 = arith.constant 0 : index
    %23 = vector.load %arg3[%c0_10, %c0_11] : memref<8x1xf32, #tpu.memory_space<vmem>>, vector<8x1xf32>
    %24 = vector.broadcast %23 : vector<8x1xf32> to vector<8x2xf32>
    %25 = arith.addf %22, %24 : vector<8x2xf32>
    %cst_12 = arith.constant 0.000000e+00 : f32
    %26 = vector.broadcast %cst_12 : f32 to vector<8x2xf32>
    %27 = arith.maximumf %25, %26 : vector<8x2xf32>
    %c0_13 = arith.constant 0 : index
    %c0_14 = arith.constant 0 : index
    %28 = vector.load %arg4[%c0_13, %c0_14] : memref<2x2xf32, #tpu.memory_space<vmem>>, vector<2x2xf32>
    %cst_15 = arith.constant dense<0.000000e+00> : vector<8x2xf32>
    %29 = tpu.matmul %27, %28, %cst_15 {dimension_numbers = #tpu.dot_dimension_numbers<[1], [0], [0], [1], [0, 0, 1, 1], [], []>} : vector<8x2xf32>, vector<2x2xf32>, vector<8x2xf32> -> vector<8x2xf32>
    %c0_16 = arith.constant 0 : index
    %c0_17 = arith.constant 0 : index
    %30 = vector.load %arg5[%c0_16, %c0_17] : memref<8x2xf32, #tpu.memory_space<vmem>>, vector<8x2xf32>
    tpu.vector_store %arg5[%c0_16, %c0_17], %29 {strides = array<i32>} : memref<8x2xf32, #tpu.memory_space<vmem>>, vector<8x2xf32>,
    return
  }
}

module attributes {stable_mosaic.version = 11 : i64} {
  func.func @_conv_bn_relu_pool_kernel(%arg0: memref<216x2xbf16, #tpu.memory_space<vmem>>, %arg1: memref<8x216xbf16, #tpu.memory_space<vmem>>, %arg2: memref<8x1xf32, #tpu.memory_space<vmem>>, %arg3: memref<8x1xf32, #tpu.memory_space<vmem>>, %arg4: memref<2x2xf32, #tpu.memory_space<vmem>>, %arg5: memref<8x2xf32, #tpu.memory_space<vmem>>) attributes {dimension_semantics = [], scalar_prefetch = 0 : i64, scratch_operands = 0 : i64, tpu.core_type = #tpu.core_type<tc>} {
    %c0 = arith.constant 0 : index
    %c0_0 = arith.constant 0 : index
    %0 = vector.load %arg1[%c0, %c0_0] : memref<8x216xbf16, #tpu.memory_space<vmem>>, vector<8x216xbf16>
    %c0_1 = arith.constant 0 : index
    %c0_2 = arith.constant 0 : index
    %1 = vector.load %arg0[%c0_1, %c0_2] : memref<216x2xbf16, #tpu.memory_space<vmem>>, vector<216x2xbf16>
    %cst = arith.constant dense<0.000000e+00> : vector<8x2xf32>
    %2 = tpu.matmul %0, %1, %cst {dimension_numbers = #tpu.dot_dimension_numbers<[1], [0], [0], [1], [0, 0, 1, 1], [], []>} : vector<8x216xbf16>, vector<216x2xbf16>, vector<8x2xf32> -> vector<8x2xf32>
    %cst_3 = arith.constant dense<0.000000e+00> : vector<8xf32>
    %3 = vector.multi_reduction <add>, %2, %cst_3 [1] : vector<8x2xf32> to vector<8xf32>
    %4 = vector.shape_cast %3 : vector<8xf32> to vector<8x1xf32>
    %cst_4 = arith.constant 2.000000e+00 : f32
    %5 = vector.broadcast %cst_4 : f32 to vector<8x1xf32>
    %6 = arith.divf %4, %5 : vector<8x1xf32>
    %7 = vector.broadcast %6 : vector<8x1xf32> to vector<8x2xf32>
    %8 = arith.subf %2, %7 : vector<8x2xf32>
    %9 = arith.mulf %8, %8 : vector<8x2xf32>
    %cst_5 = arith.constant dense<0.000000e+00> : vector<8xf32>
    %10 = vector.multi_reduction <add>, %9, %cst_5 [1] : vector<8x2xf32> to vector<8xf32>
    %11 = vector.shape_cast %10 : vector<8xf32> to vector<8x1xf32>
    %cst_6 = arith.constant 2.000000e+00 : f32
    %12 = vector.broadcast %cst_6 : f32 to vector<8x1xf32>
    %13 = arith.divf %11, %12 : vector<8x1xf32>
    %cst_7 = arith.constant 9.99999974E-6 : f32
    %14 = vector.broadcast %cst_7 : f32 to vector<8x1xf32>
    %15 = arith.addf %13, %14 : vector<8x1xf32>
    %16 = math.rsqrt %15 : vector<8x1xf32>
    %c0_8 = arith.constant 0 : index
    %c0_9 = arith.constant 0 : index
    %17 = vector.load %arg2[%c0_8, %c0_9] : memref<8x1xf32, #tpu.memory_space<vmem>>, vector<8x1xf32>
    %18 = arith.mulf %16, %17 : vector<8x1xf32>
    %19 = vector.broadcast %6 : vector<8x1xf32> to vector<8x2xf32>
    %20 = arith.subf %2, %19 : vector<8x2xf32>
    %21 = vector.broadcast %18 : vector<8x1xf32> to vector<8x2xf32>
    %22 = arith.mulf %20, %21 : vector<8x2xf32>
    %c0_10 = arith.constant 0 : index
    %c0_11 = arith.constant 0 : index
    %23 = vector.load %arg3[%c0_10, %c0_11] : memref<8x1xf32, #tpu.memory_space<vmem>>, vector<8x1xf32>
    %24 = vector.broadcast %23 : vector<8x1xf32> to vector<8x2xf32>
    %25 = arith.addf %22, %24 : vector<8x2xf32>
    %cst_12 = arith.constant 0.000000e+00 : f32
    %26 = vector.broadcast %cst_12 : f32 to vector<8x2xf32>
    %27 = arith.maximumf %25, %26 : vector<8x2xf32>
    %c0_13 = arith.constant 0 : index
    %c0_14 = arith.constant 0 : index
    %28 = vector.load %arg4[%c0_13, %c0_14] : memref<2x2xf32, #tpu.memory_space<vmem>>, vector<2x2xf32>
    %cst_15 = arith.constant dense<0.000000e+00> : vector<8x2xf32>
    %29 = tpu.matmul %27, %28, %cst_15 {dimension_numbers = #tpu.dot_dimension_numbers<[1], [0], [0], [1], [0, 0, 1, 1], [], []>} : vector<8x2xf32>, vector<2x2xf32>, vector<8x2xf32> -> vector<8x2xf32>
    %c0_16 = arith.constant 0 : index
    %c0_17 = arith.constant 0 : index
    %30 = vector.load %arg5[%c0_16, %c0_17] : memref<8x2xf32, #tpu.memory_space<vmem>>, vector<8x2xf32>
    tpu.vector_store %arg5[%c0_16, %c0_17], %29 {strides = array<i32>} : memref<8x2xf32, #tpu.memory_space<vmem>>, vector<8x2xf32>,
    return
  }
}

module attributes {stable_mosaic.version = 11 : i64} {
  func.func @_conv_bn_relu_kernel(%arg0: memref<216x2xbf16, #tpu.memory_space<vmem>>, %arg1: memref<8x216xbf16, #tpu.memory_space<vmem>>, %arg2: memref<8x1xf32, #tpu.memory_space<vmem>>, %arg3: memref<8x1xf32, #tpu.memory_space<vmem>>, %arg4: memref<8x2xf32, #tpu.memory_space<vmem>>) attributes {dimension_semantics = [], scalar_prefetch = 0 : i64, scratch_operands = 0 : i64, tpu.core_type = #tpu.core_type<tc>} {
    %c0 = arith.constant 0 : index
    %c0_0 = arith.constant 0 : index
    %0 = vector.load %arg1[%c0, %c0_0] : memref<8x216xbf16, #tpu.memory_space<vmem>>, vector<8x216xbf16>
    %c0_1 = arith.constant 0 : index
    %c0_2 = arith.constant 0 : index
    %1 = vector.load %arg0[%c0_1, %c0_2] : memref<216x2xbf16, #tpu.memory_space<vmem>>, vector<216x2xbf16>
    %cst = arith.constant dense<0.000000e+00> : vector<8x2xf32>
    %2 = tpu.matmul %0, %1, %cst {dimension_numbers = #tpu.dot_dimension_numbers<[1], [0], [0], [1], [0, 0, 1, 1], [], []>} : vector<8x216xbf16>, vector<216x2xbf16>, vector<8x2xf32> -> vector<8x2xf32>
    %cst_3 = arith.constant dense<0.000000e+00> : vector<8xf32>
    %3 = vector.multi_reduction <add>, %2, %cst_3 [1] : vector<8x2xf32> to vector<8xf32>
    %4 = vector.shape_cast %3 : vector<8xf32> to vector<8x1xf32>
    %cst_4 = arith.constant 2.000000e+00 : f32
    %5 = vector.broadcast %cst_4 : f32 to vector<8x1xf32>
    %6 = arith.divf %4, %5 : vector<8x1xf32>
    %7 = vector.broadcast %6 : vector<8x1xf32> to vector<8x2xf32>
    %8 = arith.subf %2, %7 : vector<8x2xf32>
    %9 = arith.mulf %8, %8 : vector<8x2xf32>
    %cst_5 = arith.constant dense<0.000000e+00> : vector<8xf32>
    %10 = vector.multi_reduction <add>, %9, %cst_5 [1] : vector<8x2xf32> to vector<8xf32>
    %11 = vector.shape_cast %10 : vector<8xf32> to vector<8x1xf32>
    %cst_6 = arith.constant 2.000000e+00 : f32
    %12 = vector.broadcast %cst_6 : f32 to vector<8x1xf32>
    %13 = arith.divf %11, %12 : vector<8x1xf32>
    %cst_7 = arith.constant 9.99999974E-6 : f32
    %14 = vector.broadcast %cst_7 : f32 to vector<8x1xf32>
    %15 = arith.addf %13, %14 : vector<8x1xf32>
    %16 = math.rsqrt %15 : vector<8x1xf32>
    %c0_8 = arith.constant 0 : index
    %c0_9 = arith.constant 0 : index
    %17 = vector.load %arg2[%c0_8, %c0_9] : memref<8x1xf32, #tpu.memory_space<vmem>>, vector<8x1xf32>
    %18 = arith.mulf %16, %17 : vector<8x1xf32>
    %19 = vector.broadcast %6 : vector<8x1xf32> to vector<8x2xf32>
    %20 = arith.subf %2, %19 : vector<8x2xf32>
    %21 = vector.broadcast %18 : vector<8x1xf32> to vector<8x2xf32>
    %22 = arith.mulf %20, %21 : vector<8x2xf32>
    %c0_10 = arith.constant 0 : index
    %c0_11 = arith.constant 0 : index
    %23 = vector.load %arg3[%c0_10, %c0_11] : memref<8x1xf32, #tpu.memory_space<vmem>>, vector<8x1xf32>
    %24 = vector.broadcast %23 : vector<8x1xf32> to vector<8x2xf32>
    %25 = arith.addf %22, %24 : vector<8x2xf32>
    %cst_12 = arith.constant 0.000000e+00 : f32
    %26 = vector.broadcast %cst_12 : f32 to vector<8x2xf32>
    %27 = arith.maximumf %25, %26 : vector<8x2xf32>
    %c0_13 = arith.constant 0 : index
    %c0_14 = arith.constant 0 : index
    %28 = vector.load %arg4[%c0_13, %c0_14] : memref<8x2xf32, #tpu.memory_space<vmem>>, vector<8x2xf32>
    tpu.vector_store %arg4[%c0_13, %c0_14], %27 {strides = array<i32>} : memref<8x2xf32, #tpu.memory_space<vmem>>, vector<8x2xf32>,
    return
  }
}

module attributes {stable_mosaic.version = 11 : i64} {
  func.func @_conv_bn_relu_kernel(%arg0: memref<108x16xbf16, #tpu.memory_space<vmem>>, %arg1: memref<8x108xbf16, #tpu.memory_space<vmem>>, %arg2: memref<8x1xf32, #tpu.memory_space<vmem>>, %arg3: memref<8x1xf32, #tpu.memory_space<vmem>>, %arg4: memref<8x16xf32, #tpu.memory_space<vmem>>) attributes {dimension_semantics = [], scalar_prefetch = 0 : i64, scratch_operands = 0 : i64, tpu.core_type = #tpu.core_type<tc>} {
    %c0 = arith.constant 0 : index
    %c0_0 = arith.constant 0 : index
    %0 = vector.load %arg1[%c0, %c0_0] : memref<8x108xbf16, #tpu.memory_space<vmem>>, vector<8x108xbf16>
    %c0_1 = arith.constant 0 : index
    %c0_2 = arith.constant 0 : index
    %1 = vector.load %arg0[%c0_1, %c0_2] : memref<108x16xbf16, #tpu.memory_space<vmem>>, vector<108x16xbf16>
    %cst = arith.constant dense<0.000000e+00> : vector<8x16xf32>
    %2 = tpu.matmul %0, %1, %cst {dimension_numbers = #tpu.dot_dimension_numbers<[1], [0], [0], [1], [0, 0, 1, 1], [], []>} : vector<8x108xbf16>, vector<108x16xbf16>, vector<8x16xf32> -> vector<8x16xf32>
    %cst_3 = arith.constant dense<0.000000e+00> : vector<8xf32>
    %3 = vector.multi_reduction <add>, %2, %cst_3 [1] : vector<8x16xf32> to vector<8xf32>
    %4 = vector.shape_cast %3 : vector<8xf32> to vector<8x1xf32>
    %cst_4 = arith.constant 1.600000e+01 : f32
    %5 = vector.broadcast %cst_4 : f32 to vector<8x1xf32>
    %6 = arith.divf %4, %5 : vector<8x1xf32>
    %7 = vector.broadcast %6 : vector<8x1xf32> to vector<8x16xf32>
    %8 = arith.subf %2, %7 : vector<8x16xf32>
    %9 = arith.mulf %8, %8 : vector<8x16xf32>
    %cst_5 = arith.constant dense<0.000000e+00> : vector<8xf32>
    %10 = vector.multi_reduction <add>, %9, %cst_5 [1] : vector<8x16xf32> to vector<8xf32>
    %11 = vector.shape_cast %10 : vector<8xf32> to vector<8x1xf32>
    %cst_6 = arith.constant 1.600000e+01 : f32
    %12 = vector.broadcast %cst_6 : f32 to vector<8x1xf32>
    %13 = arith.divf %11, %12 : vector<8x1xf32>
    %cst_7 = arith.constant 9.99999974E-6 : f32
    %14 = vector.broadcast %cst_7 : f32 to vector<8x1xf32>
    %15 = arith.addf %13, %14 : vector<8x1xf32>
    %16 = math.rsqrt %15 : vector<8x1xf32>
    %c0_8 = arith.constant 0 : index
    %c0_9 = arith.constant 0 : index
    %17 = vector.load %arg2[%c0_8, %c0_9] : memref<8x1xf32, #tpu.memory_space<vmem>>, vector<8x1xf32>
    %18 = arith.mulf %16, %17 : vector<8x1xf32>
    %19 = vector.broadcast %6 : vector<8x1xf32> to vector<8x16xf32>
    %20 = arith.subf %2, %19 : vector<8x16xf32>
    %21 = vector.broadcast %18 : vector<8x1xf32> to vector<8x16xf32>
    %22 = arith.mulf %20, %21 : vector<8x16xf32>
    %c0_10 = arith.constant 0 : index
    %c0_11 = arith.constant 0 : index
    %23 = vector.load %arg3[%c0_10, %c0_11] : memref<8x1xf32, #tpu.memory_space<vmem>>, vector<8x1xf32>
    %24 = vector.broadcast %23 : vector<8x1xf32> to vector<8x16xf32>
    %25 = arith.addf %22, %24 : vector<8x16xf32>
    %cst_12 = arith.constant 0.000000e+00 : f32
    %26 = vector.broadcast %cst_12 : f32 to vector<8x16xf32>
    %27 = arith.maximumf %25, %26 : vector<8x16xf32>
    %c0_13 = arith.constant 0 : index
    %c0_14 = arith.constant 0 : index
    %28 = vector.load %arg4[%c0_13, %c0_14] : memref<8x16xf32, #tpu.memory_space<vmem>>, vector<8x16xf32>
    tpu.vector_store %arg4[%c0_13, %c0_14], %27 {strides = array<i32>} : memref<8x16xf32, #tpu.memory_space<vmem>>, vector<8x16xf32>,
    return
  }
}

module attributes {stable_mosaic.version = 11 : i64} {
  func.func @_conv_bn_relu_kernel(%arg0: memref<108x128xbf16, #tpu.memory_space<vmem>>, %arg1: memref<4x108xbf16, #tpu.memory_space<vmem>>, %arg2: memref<4x1xf32, #tpu.memory_space<vmem>>, %arg3: memref<4x1xf32, #tpu.memory_space<vmem>>, %arg4: memref<4x128xf32, #tpu.memory_space<vmem>>) attributes {dimension_semantics = [], scalar_prefetch = 0 : i64, scratch_operands = 0 : i64, tpu.core_type = #tpu.core_type<tc>} {
    %c0 = arith.constant 0 : index
    %c0_0 = arith.constant 0 : index
    %0 = vector.load %arg1[%c0, %c0_0] : memref<4x108xbf16, #tpu.memory_space<vmem>>, vector<4x108xbf16>
    %c0_1 = arith.constant 0 : index
    %c0_2 = arith.constant 0 : index
    %1 = vector.load %arg0[%c0_1, %c0_2] : memref<108x128xbf16, #tpu.memory_space<vmem>>, vector<108x128xbf16>
    %cst = arith.constant dense<0.000000e+00> : vector<4x128xf32>
    %2 = tpu.matmul %0, %1, %cst {dimension_numbers = #tpu.dot_dimension_numbers<[1], [0], [0], [1], [0, 0, 1, 1], [], []>} : vector<4x108xbf16>, vector<108x128xbf16>, vector<4x128xf32> -> vector<4x128xf32>
    %cst_3 = arith.constant dense<0.000000e+00> : vector<4xf32>
    %3 = vector.multi_reduction <add>, %2, %cst_3 [1] : vector<4x128xf32> to vector<4xf32>
    %4 = vector.shape_cast %3 : vector<4xf32> to vector<4x1xf32>
    %cst_4 = arith.constant 1.280000e+02 : f32
    %5 = vector.broadcast %cst_4 : f32 to vector<4x1xf32>
    %6 = arith.divf %4, %5 : vector<4x1xf32>
    %7 = vector.broadcast %6 : vector<4x1xf32> to vector<4x128xf32>
    %8 = arith.subf %2, %7 : vector<4x128xf32>
    %9 = arith.mulf %8, %8 : vector<4x128xf32>
    %cst_5 = arith.constant dense<0.000000e+00> : vector<4xf32>
    %10 = vector.multi_reduction <add>, %9, %cst_5 [1] : vector<4x128xf32> to vector<4xf32>
    %11 = vector.shape_cast %10 : vector<4xf32> to vector<4x1xf32>
    %cst_6 = arith.constant 1.280000e+02 : f32
    %12 = vector.broadcast %cst_6 : f32 to vector<4x1xf32>
    %13 = arith.divf %11, %12 : vector<4x1xf32>
    %cst_7 = arith.constant 9.99999974E-6 : f32
    %14 = vector.broadcast %cst_7 : f32 to vector<4x1xf32>
    %15 = arith.addf %13, %14 : vector<4x1xf32>
    %16 = math.rsqrt %15 : vector<4x1xf32>
    %c0_8 = arith.constant 0 : index
    %c0_9 = arith.constant 0 : index
    %17 = vector.load %arg2[%c0_8, %c0_9] : memref<4x1xf32, #tpu.memory_space<vmem>>, vector<4x1xf32>
    %18 = arith.mulf %16, %17 : vector<4x1xf32>
    %19 = vector.broadcast %6 : vector<4x1xf32> to vector<4x128xf32>
    %20 = arith.subf %2, %19 : vector<4x128xf32>
    %21 = vector.broadcast %18 : vector<4x1xf32> to vector<4x128xf32>
    %22 = arith.mulf %20, %21 : vector<4x128xf32>
    %c0_10 = arith.constant 0 : index
    %c0_11 = arith.constant 0 : index
    %23 = vector.load %arg3[%c0_10, %c0_11] : memref<4x1xf32, #tpu.memory_space<vmem>>, vector<4x1xf32>
    %24 = vector.broadcast %23 : vector<4x1xf32> to vector<4x128xf32>
    %25 = arith.addf %22, %24 : vector<4x128xf32>
    %cst_12 = arith.constant 0.000000e+00 : f32
    %26 = vector.broadcast %cst_12 : f32 to vector<4x128xf32>
    %27 = arith.maximumf %25, %26 : vector<4x128xf32>
    %c0_13 = arith.constant 0 : index
    %c0_14 = arith.constant 0 : index
    %28 = vector.load %arg4[%c0_13, %c0_14] : memref<4x128xf32, #tpu.memory_space<vmem>>, vector<4x128xf32>
    tpu.vector_store %arg4[%c0_13, %c0_14], %27 {strides = array<i32>} : memref<4x128xf32, #tpu.memory_space<vmem>>, vector<4x128xf32>,
    return
  }
}

</mosaic_0001>

<llo_original>
// kernel: multicubenet_forward.15
$region0: #{multicubenet_forward.15}
  #allocation0 [shape = 'u32[]', space=smem, size = 0x4, offset = 0x4, fixed_abs, tag = 'smem constant byte address 0x4 - core index']
  #allocation1 [shape = 'u32[144,128]{1,0:T(1,128)}', space=vmem, size = 0x12000, scoped, tag = 'internal scratch']
  %s0 = inlined_call_operand.vmem [shape: bf16[81,1024], index: 0, kind: input, shape index: {}]
  %s1 = inlined_call_operand.vmem [shape: bf16[4,81], index: 1, kind: input, shape index: {}]
  %s2 = inlined_call_operand.vmem [shape: f32[4,1], index: 2, kind: input, shape index: {}]
  %s3 = inlined_call_operand.vmem [shape: f32[4,1], index: 3, kind: input, shape index: {}]
  %s4 = inlined_call_operand.vmem [shape: f32[4,1024], index: 4, kind: output, shape index: {}]
  %s5 = sld [smem:[#allocation0]]
  $region26: #{multicubenet_forward.15} parent=0
    _
  %s7 = ssub.s32 1, %s5
  %s8 = scalar_select 0, %s7, %s5
  // Predicated region
  $region2: #{multicubenet_forward.15} parent=0 // pred_check
    _
  $region3: #{multicubenet_forward.15} parent=0 // pred_check_branch
    %10 = sbr.rel (0) target = $region5
  $region4: #{multicubenet_forward.15} parent=0 // pred_region
    _
  $region5: #{multicubenet_forward.15} parent=0 // pred_fallthru
    _
  // Predicated region
  $region6: #{multicubenet_forward.15} parent=0 // pred_check
    _
  $region7: #{multicubenet_forward.15} parent=0 // pred_check_branch
    %12 = sbr.rel (0) target = $region9
  $region8: #{multicubenet_forward.15} parent=0 // pred_region
    _
  $region9: #{multicubenet_forward.15} parent=0 // pred_fallthru
    _
  // Predicated region
  $region10: #{multicubenet_forward.15} parent=0 // pred_check
    _
  $region11: #{multicubenet_forward.15} parent=0 // pred_check_branch
    %14 = sbr.rel (0) target = $region13
  $region12: #{multicubenet_forward.15} parent=0 // pred_region
    _
  $region13: #{multicubenet_forward.15} parent=0 // pred_fallthru
    _
  // Predicated region
  $region14: #{multicubenet_forward.15} parent=0 // pred_check
    _
  $region15: #{multicubenet_forward.15} parent=0 // pred_check_branch
    %16 = sbr.rel (0) target = $region17
  $region16: #{multicubenet_forward.15} parent=0 // pred_region
    _
  $region17: #{multicubenet_forward.15} parent=0 // pred_fallthru
    _
  %v18 = vld [vmem:[%s1] sm:$0x3]
  %v19 = vld [vmem:[%s0] sm:$0xff]
  %v20 = vld [vmem:[%s0 + $0x8] sm:$0xff]
  %v21 = vld [vmem:[%s0 + $0x10] sm:$0xff]
  %v22 = vld [vmem:[%s0 + $0x18] sm:$0xff]
  %v23 = vld [vmem:[%s0 + $0x20] sm:$0xff]
  %v24 = vld [vmem:[%s0 + $0x28] sm:$0xff]
  %v25 = vld [vmem:[%s0 + $0x30] sm:$0xff]
  %v26 = vld [vmem:[%s0 + $0x38] sm:$0xff]
  %v27 = vld [vmem:[%s0 + $0x40] sm:$0xff]
  %v28 = vld [vmem:[%s0 + $0x48] sm:$0xff]
  %v29 = vld [vmem:[%s0 + $0x50] sm:$0xff]
  %v30 = vld [vmem:[%s0 + $0x58] sm:$0xff]
  %v31 = vld [vmem:[%s0 + $0x60] sm:$0xff]
  %v32 = vld [vmem:[%s0 + $0x68] sm:$0xff]
  %v33 = vld [vmem:[%s0 + $0x70] sm:$0xff]
  %v34 = vld [vmem:[%s0 + $0x78] sm:$0xff]
  %v35 = vld [vmem:[%s0 + $0x80] sm:$0xff]
  %v36 = vld [vmem:[%s0 + $0x88] sm:$0xff]
  %v37 = vld [vmem:[%s0 + $0x90] sm:$0xff]
  %v38 = vld [vmem:[%s0 + $0x98] sm:$0xff]
  %v39 = vld [vmem:[%s0 + $0xa0] sm:$0xff]
  %v40 = vld [vmem:[%s0 + $0xa8] sm:$0xff]
  %v41 = vld [vmem:[%s0 + $0xb0] sm:$0xff]
  %v42 = vld [vmem:[%s0 + $0xb8] sm:$0xff]
  %v43 = vld [vmem:[%s0 + $0xc0] sm:$0xff]
  %v44 = vld [vmem:[%s0 + $0xc8] sm:$0xff]
  %v45 = vld [vmem:[%s0 + $0xd0] sm:$0xff]
  %v46 = vld [vmem:[%s0 + $0xd8] sm:$0xff]
  %v47 = vld [vmem:[%s0 + $0xe0] sm:$0xff]
  %v48 = vld [vmem:[%s0 + $0xe8] sm:$0xff]
  %v49 = vld [vmem:[%s0 + $0xf0] sm:$0xff]
  %v50 = vld [vmem:[%s0 + $0xf8] sm:$0xff]
  %v51 = vld [vmem:[%s0 + $0x100] sm:$0xff]
  %v52 = vld [vmem:[%s0 + $0x108] sm:$0xff]
  %v53 = vld [vmem:[%s0 + $0x110] sm:$0xff]
  %v54 = vld [vmem:[%s0 + $0x118] sm:$0xff]
  %v55 = vld [vmem:[%s0 + $0x120] sm:$0xff]
  %v56 = vld [vmem:[%s0 + $0x128] sm:$0xff]
  %v57 = vld [vmem:[%s0 + $0x130] sm:$0xff]
  %v58 = vld [vmem:[%s0 + $0x138] sm:$0xff]
  %v59 = vld [vmem:[%s0 + $0x140] sm:$0x11]
  %v60 = vld [vmem:[%s0 + $0x148] sm:$0x11]
  %v61 = vld [vmem:[%s0 + $0x150] sm:$0x11]
  %v62 = vld [vmem:[%s0 + $0x158] sm:$0x11]
  %v107 = vunpack.c.l.b16 %v19
  %v108 = vunpack.c.h.b16 %v19
  %v109 = vunpack.c.l.b16 %v20
  %v110 = vunpack.c.h.b16 %v20
  %v111 = vunpack.c.l.b16 %v21
  %v112 = vunpack.c.h.b16 %v21
  %v113 = vunpack.c.l.b16 %v22
  %v114 = vunpack.c.h.b16 %v22
  %v115 = vunpack.c.l.b16 %v23
  %v116 = vunpack.c.h.b16 %v23
  %v117 = vunpack.c.l.b16 %v24
  %v118 = vunpack.c.h.b16 %v24
  %v119 = vunpack.c.l.b16 %v25
  %v120 = vunpack.c.h.b16 %v25
  %v121 = vunpack.c.l.b16 %v26
  %v122 = vunpack.c.h.b16 %v26
  %v123 = vunpack.c.l.b16 %v27
  %v124 = vunpack.c.h.b16 %v27
  %v125 = vunpack.c.l.b16 %v28
  %v126 = vunpack.c.h.b16 %v28
  %v127 = vunpack.c.l.b16 %v29
  %v128 = vunpack.c.h.b16 %v29
  %v129 = vunpack.c.l.b16 %v30
  %v130 = vunpack.c.h.b16 %v30
  %v131 = vunpack.c.l.b16 %v31
  %v132 = vunpack.c.h.b16 %v31
  %v133 = vunpack.c.l.b16 %v32
  %v134 = vunpack.c.h.b16 %v32
  %v135 = vunpack.c.l.b16 %v33
  %v136 = vunpack.c.h.b16 %v33
  %v137 = vunpack.c.l.b16 %v34
  %v138 = vunpack.c.h.b16 %v34
  %v139 = vunpack.c.l.b16 %v35
  %v140 = vunpack.c.h.b16 %v35
  %v141 = vunpack.c.l.b16 %v36
  %v142 = vunpack.c.h.b16 %v36
  %v143 = vunpack.c.l.b16 %v37
  %v144 = vunpack.c.h.b16 %v37
  %v145 = vunpack.c.l.b16 %v38
  %v146 = vunpack.c.h.b16 %v38
  %v147 = vunpack.c.l.b16 %v39
  %v148 = vunpack.c.h.b16 %v39
  %v149 = vunpack.c.l.b16 %v40
  %v150 = vunpack.c.h.b16 %v40
  %v151 = vunpack.c.l.b16 %v41
  %v152 = vunpack.c.h.b16 %v41
  %v153 = vunpack.c.l.b16 %v42
  %v154 = vunpack.c.h.b16 %v42
  %v155 = vunpack.c.l.b16 %v43
  %v156 = vunpack.c.h.b16 %v43
  %v157 = vunpack.c.l.b16 %v44
  %v158 = vunpack.c.h.b16 %v44
  %v159 = vunpack.c.l.b16 %v45
  %v160 = vunpack.c.h.b16 %v45
  %v161 = vunpack.c.l.b16 %v46
  %v162 = vunpack.c.h.b16 %v46
  %v163 = vunpack.c.l.b16 %v47
  %v164 = vunpack.c.h.b16 %v47
  %v165 = vunpack.c.l.b16 %v48
  %v166 = vunpack.c.h.b16 %v48
  %v167 = vunpack.c.l.b16 %v49
  %v168 = vunpack.c.h.b16 %v49
  %v169 = vunpack.c.l.b16 %v50
  %v170 = vunpack.c.h.b16 %v50
  %v171 = vunpack.c.l.b16 %v51
  %v172 = vunpack.c.h.b16 %v51
  %v173 = vunpack.c.l.b16 %v52
  %v174 = vunpack.c.h.b16 %v52
  %v175 = vunpack.c.l.b16 %v53
  %v176 = vunpack.c.h.b16 %v53
  %v177 = vunpack.c.l.b16 %v54
  %v178 = vunpack.c.h.b16 %v54
  %v179 = vunpack.c.l.b16 %v55
  %v180 = vunpack.c.h.b16 %v55
  %v181 = vunpack.c.l.b16 %v56
  %v182 = vunpack.c.h.b16 %v56
  %v183 = vunpack.c.l.b16 %v57
  %v184 = vunpack.c.h.b16 %v57
  %v185 = vunpack.c.l.b16 %v58
  %v186 = vunpack.c.h.b16 %v58
  %v187 = vunpack.c.l.b16 %v59
  %v188 = vunpack.c.h.b16 %v59
  %v189 = vunpack.c.l.b16 %v60
  %v190 = vunpack.c.h.b16 %v60
  %v191 = vunpack.c.l.b16 %v61
  %v192 = vunpack.c.h.b16 %v61
  %v193 = vunpack.c.l.b16 %v62
  %v194 = vunpack.c.h.b16 %v62
  %v195 = vpack.c.b16 %v115, %v107
  %v196 = vpack.c.b16 %v116, %v108
  %v197 = vpack.c.b16 %v117, %v109
  %v198 = vpack.c.b16 %v118, %v110
  %v199 = vpack.c.b16 %v119, %v111
  %v200 = vpack.c.b16 %v120, %v112
  %v201 = vpack.c.b16 %v121, %v113
  %v202 = vpack.c.b16 %v122, %v114
  %v203 = vpack.c.b16 %v131, %v123
  %v204 = vpack.c.b16 %v132, %v124
  %v205 = vpack.c.b16 %v133, %v125
  %v206 = vpack.c.b16 %v134, %v126
  %v207 = vpack.c.b16 %v135, %v127
  %v208 = vpack.c.b16 %v136, %v128
  %v209 = vpack.c.b16 %v137, %v129
  %v210 = vpack.c.b16 %v138, %v130
  %v211 = vpack.c.b16 %v147, %v139
  %v212 = vpack.c.b16 %v148, %v140
  %v213 = vpack.c.b16 %v149, %v141
  %v214 = vpack.c.b16 %v150, %v142
  %v215 = vpack.c.b16 %v151, %v143
  %v216 = vpack.c.b16 %v152, %v144
  %v217 = vpack.c.b16 %v153, %v145
  %v218 = vpack.c.b16 %v154, %v146
  %v219 = vpack.c.b16 %v163, %v155
  %v220 = vpack.c.b16 %v164, %v156
  %v221 = vpack.c.b16 %v165, %v157
  %v222 = vpack.c.b16 %v166, %v158
  %v223 = vpack.c.b16 %v167, %v159
  %v224 = vpack.c.b16 %v168, %v160
  %v225 = vpack.c.b16 %v169, %v161
  %v226 = vpack.c.b16 %v170, %v162
  %v227 = vpack.c.b16 %v179, %v171
  %v228 = vpack.c.b16 %v180, %v172
  %v229 = vpack.c.b16 %v181, %v173
  %v230 = vpack.c.b16 %v182, %v174
  %v231 = vpack.c.b16 %v183, %v175
  %v232 = vpack.c.b16 %v184, %v176
  %v233 = vpack.c.b16 %v185, %v177
  %v234 = vpack.c.b16 %v186, %v178
  %v235 = vpack.c.b16 %v187, %v187
  %v236 = vpack.c.b16 %v188, %v188
  %v237 = vpack.c.b16 %v189, %v189
  %v238 = vpack.c.b16 %v190, %v190
  %v239 = vpack.c.b16 %v191, %v191
  %v240 = vpack.c.b16 %v192, %v192
  %v241 = vpack.c.b16 %v193, %v193
  %v242 = vpack.c.b16 %v194, %v194
  %vm283 = vcmask 662528
  %v285 = vsel %vm283, %v18, 0
  %vm287 = vcmask 1040384
  %v288 = vsel 0, 4294967295, 65535
  %v289 = vsel %vm287, %v288, 0
  %v291 = vand.u32 %v235, %v289
  %v294 = vand.u32 %v236, %v289
  %v297 = vand.u32 %v237, %v289
  %v300 = vand.u32 %v238, %v289
  %v303 = vand.u32 %v239, %v289
  %v306 = vand.u32 %v240, %v289
  %v309 = vand.u32 %v241, %v289
  %v312 = vand.u32 %v242, %v289
  %314 = vmatprep.subr.bf16.mxu0 %v196
  %315 = vmatpush1.bf16.msra.mxu0 %v195
  %316 = vmatprep.subr.bf16.mxu0 %v204
  %317 = vmatpush1.bf16.msra.mxu0 %v203
  %318 = vmatprep.subr.bf16.mxu0 %v212
  %319 = vmatpush1.bf16.msra.mxu0 %v211
  %320 = vmatprep.subr.bf16.mxu0 %v220
  %321 = vmatpush1.bf16.msra.mxu0 %v219
  %322 = vmatprep.subr.bf16.mxu0 %v228
  %323 = vmatpush1.bf16.msra.mxu0 %v227
  %324 = vmatprep.subr.bf16.mxu0 %v294
  %325 = vmatpush1.bf16.msra.mxu0 %v291
  %326 = vmatprep.subr.bf16.mxu0 0
  %327 = vmatpush1.bf16.msra.mxu0 0
  %328 = vmatprep.subr.bf16.mxu0 0
  %329 = vmatpush1.bf16.msra.mxu0 0
  %330 = vmatprep.subr.bf16.mxu0 0
  %331 = vmatpush1.bf16.msra.mxu0 0
  %332 = vmatprep.subr.bf16.mxu0 0
  %333 = vmatpush1.bf16.msra.mxu0 0
  %334 = vmatprep.subr.bf16.mxu0 0
  %335 = vmatpush1.bf16.msra.mxu0 0
  %336 = vmatprep.subr.bf16.mxu0 0
  %337 = vmatpush1.bf16.msra.mxu0 0
  %338 = vmatprep.subr.bf16.mxu0 0
  %339 = vmatpush1.bf16.msra.mxu0 0
  %340 = vmatprep.subr.bf16.mxu0 0
  %341 = vmatpush1.bf16.msra.mxu0 0
  %342 = vmatprep.subr.bf16.mxu0 0
  %343 = vmatpush1.bf16.msra.mxu0 0
  %344 = vmatprep.subr.bf16.mxu0 0
  %345 = vmatpush1.bf16.msra.mxu0 0
  %346 = vmatprep.mubr.bf16.mxu0 0
  %347 = vmatmul.mubr.bf16.gmra.mrb[0].mxu0 %v285
  %v348 = vpop.f32.mrb[0].mxu0
  %v349 = vadd.f32 0.0, %v348
  %v350 = vpop.f32.mrb[0].mxu0
  %v351 = vadd.f32 0.0, %v350
  %v352 = vpop.f32.mrb[0].mxu0
  %v353 = vpop.f32.mrb[0].mxu0
  %354 = vdwg.mxu0
  %355 = vmatprep.subr.bf16.mxu0 %v198
  %356 = vmatpush1.bf16.msra.mxu0 %v197
  %357 = vmatprep.subr.bf16.mxu0 %v206
  %358 = vmatpush1.bf16.msra.mxu0 %v205
  %359 = vmatprep.subr.bf16.mxu0 %v214
  %360 = vmatpush1.bf16.msra.mxu0 %v213
  %361 = vmatprep.subr.bf16.mxu0 %v222
  %362 = vmatpush1.bf16.msra.mxu0 %v221
  %363 = vmatprep.subr.bf16.mxu0 %v230
  %364 = vmatpush1.bf16.msra.mxu0 %v229
  %365 = vmatprep.subr.bf16.mxu0 %v300
  %366 = vmatpush1.bf16.msra.mxu0 %v297
  %367 = vmatprep.subr.bf16.mxu0 0
  %368 = vmatpush1.bf16.msra.mxu0 0
  %369 = vmatprep.subr.bf16.mxu0 0
  %370 = vmatpush1.bf16.msra.mxu0 0
  %371 = vmatprep.subr.bf16.mxu0 0
  %372 = vmatpush1.bf16.msra.mxu0 0
  %373 = vmatprep.subr.bf16.mxu0 0
  %374 = vmatpush1.bf16.msra.mxu0 0
  %375 = vmatprep.subr.bf16.mxu0 0
  %376 = vmatpush1.bf16.msra.mxu0 0
  %377 = vmatprep.subr.bf16.mxu0 0
  %378 = vmatpush1.bf16.msra.mxu0 0
  %379 = vmatprep.subr.bf16.mxu0 0
  %380 = vmatpush1.bf16.msra.mxu0 0
  %381 = vmatprep.subr.bf16.mxu0 0
  %382 = vmatpush1.bf16.msra.mxu0 0
  %383 = vmatprep.subr.bf16.mxu0 0
  %384 = vmatpush1.bf16.msra.mxu0 0
  %385 = vmatprep.subr.bf16.mxu0 0
  %386 = vmatpush1.bf16.msra.mxu0 0
  %387 = vmatprep.mubr.bf16.mxu0 0
  %388 = vmatmul.mubr.bf16.gmra.mrb[0].mxu0 %v285
  %v389 = vpop.f32.mrb[0].mxu0
  %v390 = vadd.f32 0.0, %v389
  %v391 = vpop.f32.mrb[0].mxu0
  %v392 = vadd.f32 0.0, %v391
  %v393 = vpop.f32.mrb[0].mxu0
  %v394 = vpop.f32.mrb[0].mxu0
  %395 = vdwg.mxu0
  %396 = vmatprep.subr.bf16.mxu0 %v200
  %397 = vmatpush1.bf16.msra.mxu0 %v199
  %398 = vmatprep.subr.bf16.mxu0 %v208
  %399 = vmatpush1.bf16.msra.mxu0 %v207
  %400 = vmatprep.subr.bf16.mxu0 %v216
  %401 = vmatpush1.bf16.msra.mxu0 %v215
  %402 = vmatprep.subr.bf16.mxu0 %v224
  %403 = vmatpush1.bf16.msra.mxu0 %v223
  %404 = vmatprep.subr.bf16.mxu0 %v232
  %405 = vmatpush1.bf16.msra.mxu0 %v231
  %406 = vmatprep.subr.bf16.mxu0 %v306
  %407 = vmatpush1.bf16.msra.mxu0 %v303
  %408 = vmatprep.subr.bf16.mxu0 0
  %409 = vmatpush1.bf16.msra.mxu0 0
  %410 = vmatprep.subr.bf16.mxu0 0
  %411 = vmatpush1.bf16.msra.mxu0 0
  %412 = vmatprep.subr.bf16.mxu0 0
  %413 = vmatpush1.bf16.msra.mxu0 0
  %414 = vmatprep.subr.bf16.mxu0 0
  %415 = vmatpush1.bf16.msra.mxu0 0
  %416 = vmatprep.subr.bf16.mxu0 0
  %417 = vmatpush1.bf16.msra.mxu0 0
  %418 = vmatprep.subr.bf16.mxu0 0
  %419 = vmatpush1.bf16.msra.mxu0 0
  %420 = vmatprep.subr.bf16.mxu0 0
  %421 = vmatpush1.bf16.msra.mxu0 0
  %422 = vmatprep.subr.bf16.mxu0 0
  %423 = vmatpush1.bf16.msra.mxu0 0
  %424 = vmatprep.subr.bf16.mxu0 0
  %425 = vmatpush1.bf16.msra.mxu0 0
  %426 = vmatprep.subr.bf16.mxu0 0
  %427 = vmatpush1.bf16.msra.mxu0 0
  %428 = vmatprep.mubr.bf16.mxu0 0
  %429 = vmatmul.mubr.bf16.gmra.mrb[0].mxu0 %v285
  %v430 = vpop.f32.mrb[0].mxu0
  %v431 = vadd.f32 0.0, %v430
  %v432 = vpop.f32.mrb[0].mxu0
  %v433 = vadd.f32 0.0, %v432
  %v434 = vpop.f32.mrb[0].mxu0
  %v435 = vpop.f32.mrb[0].mxu0
  %436 = vdwg.mxu0
  %437 = vmatprep.subr.bf16.mxu0 %v202
  %438 = vmatpush1.bf16.msra.mxu0 %v201
  %439 = vmatprep.subr.bf16.mxu0 %v210
  %440 = vmatpush1.bf16.msra.mxu0 %v209
  %441 = vmatprep.subr.bf16.mxu0 %v218
  %442 = vmatpush1.bf16.msra.mxu0 %v217
  %443 = vmatprep.subr.bf16.mxu0 %v226
  %444 = vmatpush1.bf16.msra.mxu0 %v225
  %445 = vmatprep.subr.bf16.mxu0 %v234
  %446 = vmatpush1.bf16.msra.mxu0 %v233
  %447 = vmatprep.subr.bf16.mxu0 %v312
  %448 = vmatpush1.bf16.msra.mxu0 %v309
  %449 = vmatprep.subr.bf16.mxu0 0
  %450 = vmatpush1.bf16.msra.mxu0 0
  %451 = vmatprep.subr.bf16.mxu0 0
  %452 = vmatpush1.bf16.msra.mxu0 0
  %453 = vmatprep.subr.bf16.mxu0 0
  %454 = vmatpush1.bf16.msra.mxu0 0
  %455 = vmatprep.subr.bf16.mxu0 0
  %456 = vmatpush1.bf16.msra.mxu0 0
  %457 = vmatprep.subr.bf16.mxu0 0
  %458 = vmatpush1.bf16.msra.mxu0 0
  %459 = vmatprep.subr.bf16.mxu0 0
  %460 = vmatpush1.bf16.msra.mxu0 0
  %461 = vmatprep.subr.bf16.mxu0 0
  %462 = vmatpush1.bf16.msra.mxu0 0
  %463 = vmatprep.subr.bf16.mxu0 0
  %464 = vmatpush1.bf16.msra.mxu0 0
  %465 = vmatprep.subr.bf16.mxu0 0
  %466 = vmatpush1.bf16.msra.mxu0 0
  %467 = vmatprep.subr.bf16.mxu0 0
  %468 = vmatpush1.bf16.msra.mxu0 0
  %469 = vmatprep.mubr.bf16.mxu0 0
  %470 = vmatmul.mubr.bf16.gmra.mrb[0].mxu0 %v285
  %v471 = vpop.f32.mrb[0].mxu0
  %v472 = vadd.f32 0.0, %v471
  %v473 = vpop.f32.mrb[0].mxu0
  %v474 = vadd.f32 0.0, %v473
  %v475 = vpop.f32.mrb[0].mxu0
  %v476 = vpop.f32.mrb[0].mxu0
  %477 = vdwg.mxu0
  %vm478 = vcmask 1043456
  %v479 = vsel %vm478, %v349, 0.0
  %v480 = vsel %vm478, %v351, 0.0
  %v481 = vadd.f32 %v479, %v480
  %v482 = vsel %vm478, %v390, 0.0
  %v483 = vadd.f32 %v481, %v482
  %v484 = vsel %vm478, %v392, 0.0
  %v485 = vadd.f32 %v483, %v484
  %v486 = vsel %vm478, %v431, 0.0
  %v487 = vadd.f32 %v485, %v486
  %v488 = vsel %vm478, %v433, 0.0
  %v489 = vadd.f32 %v487, %v488
  %v490 = vsel %vm478, %v472, 0.0
  %v491 = vadd.f32 %v489, %v490
  %v492 = vsel %vm478, %v474, 0.0
  %v493 = vadd.f32 %v491, %v492
  %494 = vadd.xlane.f32.xlu0 %v493
  %v495 = vpop.xlane.xlu0 %494
  %v496 = vrcp.pop 1024.0
  %v497 = vmul.f32 %v495, %v496
  %v498 = vsub.f32 %v349, %v497
  %v499 = vsub.f32 %v351, %v497
  %v500 = vsub.f32 %v390, %v497
  %v501 = vsub.f32 %v392, %v497
  %v502 = vsub.f32 %v431, %v497
  %v503 = vsub.f32 %v433, %v497
  %v504 = vsub.f32 %v472, %v497
  %v505 = vsub.f32 %v474, %v497
  %v506 = vmul.f32 %v498, %v498
  %v507 = vmul.f32 %v499, %v499
  %v508 = vmul.f32 %v500, %v500
  %v509 = vmul.f32 %v501, %v501
  %v510 = vmul.f32 %v502, %v502
  %v511 = vmul.f32 %v503, %v503
  %v512 = vmul.f32 %v504, %v504
  %v513 = vmul.f32 %v505, %v505
  %v514 = vsel %vm478, %v506, 0.0
  %v515 = vsel %vm478, %v507, 0.0
  %v516 = vadd.f32 %v514, %v515
  %v517 = vsel %vm478, %v508, 0.0
  %v518 = vadd.f32 %v516, %v517
  %v519 = vsel %vm478, %v509, 0.0
  %v520 = vadd.f32 %v518, %v519
  %v521 = vsel %vm478, %v510, 0.0
  %v522 = vadd.f32 %v520, %v521
  %v523 = vsel %vm478, %v511, 0.0
  %v524 = vadd.f32 %v522, %v523
  %v525 = vsel %vm478, %v512, 0.0
  %v526 = vadd.f32 %v524, %v525
  %v527 = vsel %vm478, %v513, 0.0
  %v528 = vadd.f32 %v526, %v527
  %529 = vadd.xlane.f32.xlu0 %v528
  %v530 = vpop.xlane.xlu0 %529
  %v531 = vmul.f32 %v530, %v496
  %v532 = vadd.f32 %v531, 1e-05
  %v533 = vrsqrt.pop %v532
  %v534 = vld [vmem:[%s2] sm:$0xf]
  %v535 = vmul.f32 %v533, %v534
  %537 = vset.pattern.permute.xlu0 0
  %538 = vperm.xlu0 %537, %v535
  %v539 = vpop.permute.xlu0 %538
  %v541 = vmul.f32 %v498, %v539
  %v542 = vmul.f32 %v499, %v539
  %v543 = vmul.f32 %v500, %v539
  %v544 = vmul.f32 %v501, %v539
  %v545 = vmul.f32 %v502, %v539
  %v546 = vmul.f32 %v503, %v539
  %v547 = vmul.f32 %v504, %v539
  %v548 = vmul.f32 %v505, %v539
  %v549 = vld [vmem:[%s3] sm:$0xf]
  %551 = vset.pattern.permute.xlu0 0
  %552 = vperm.xlu0 %551, %v549
  %v553 = vpop.permute.xlu0 %552
  %v555 = vadd.f32 %v541, %v553
  %v556 = vadd.f32 %v542, %v553
  %v557 = vadd.f32 %v543, %v553
  %v558 = vadd.f32 %v544, %v553
  %v559 = vadd.f32 %v545, %v553
  %v560 = vadd.f32 %v546, %v553
  %v561 = vadd.f32 %v547, %v553
  %v562 = vadd.f32 %v548, %v553
  %v563 = vmax.f32 %v555, 0.0
  %v564 = vmax.f32 %v556, 0.0
  %v565 = vmax.f32 %v557, 0.0
  %v566 = vmax.f32 %v558, 0.0
  %v567 = vmax.f32 %v559, 0.0
  %v568 = vmax.f32 %v560, 0.0
  %v569 = vmax.f32 %v561, 0.0
  %v570 = vmax.f32 %v562, 0.0
  %v579 = vcombine.low %v563, %v564
  %v580 = vcombine.low %v565, %v566
  %v581 = vcombine.low %v567, %v568
  %v582 = vcombine.low %v569, %v570
  %587 = vst [vmem:[%s4] sm:$0xff] %v579
  %588 = vst [vmem:[%s4 + $0x8] sm:$0xff] %v580
  %589 = vst [vmem:[%s4 + $0x10] sm:$0xff] %v581
  %590 = vst [vmem:[%s4 + $0x18] sm:$0xff] %v582
  // Predicated region
  $region18: #{multicubenet_forward.15} parent=0 // pred_check
    _
  $region19: #{multicubenet_forward.15} parent=0 // pred_check_branch
    %592 = sbr.rel (0) target = $region21
  $region20: #{multicubenet_forward.15} parent=0 // pred_region
    _
  $region21: #{multicubenet_forward.15} parent=0 // pred_fallthru
    _
  // Predicated region
  $region22: #{multicubenet_forward.15} parent=0 // pred_check
    _
  $region23: #{multicubenet_forward.15} parent=0 // pred_check_branch
    %594 = sbr.rel (0) target = $region25
  $region24: #{multicubenet_forward.15} parent=0 // pred_region
    _
  $region25: #{multicubenet_forward.15} parent=0 // pred_fallthru
    _

// kernel: multicubenet_forward.20
$region0: #{multicubenet_forward.20}
  #allocation0 [shape = 'u32[]', space=smem, size = 0x4, offset = 0x4, fixed_abs, tag = 'smem constant byte address 0x4 - core index']
  #allocation1 [shape = 'u32[144,128]{1,0:T(1,128)}', space=vmem, size = 0x12000, scoped, tag = 'internal scratch']
  %s0 = inlined_call_operand.vmem [shape: bf16[189,128], index: 0, kind: input, shape index: {}]
  %s1 = inlined_call_operand.vmem [shape: bf16[4,189], index: 1, kind: input, shape index: {}]
  %s2 = inlined_call_operand.vmem [shape: f32[4,1], index: 2, kind: input, shape index: {}]
  %s3 = inlined_call_operand.vmem [shape: f32[4,1], index: 3, kind: input, shape index: {}]
  %s4 = inlined_call_operand.vmem [shape: f32[4,128], index: 4, kind: output, shape index: {}]
  %s5 = sld [smem:[#allocation0]]
  $region26: #{multicubenet_forward.20} parent=0
    _
  %s7 = ssub.s32 1, %s5
  %s8 = scalar_select 0, %s7, %s5
  // Predicated region
  $region2: #{multicubenet_forward.20} parent=0 // pred_check
    _
  $region3: #{multicubenet_forward.20} parent=0 // pred_check_branch
    %10 = sbr.rel (0) target = $region5
  $region4: #{multicubenet_forward.20} parent=0 // pred_region
    _
  $region5: #{multicubenet_forward.20} parent=0 // pred_fallthru
    _
  // Predicated region
  $region6: #{multicubenet_forward.20} parent=0 // pred_check
    _
  $region7: #{multicubenet_forward.20} parent=0 // pred_check_branch
    %12 = sbr.rel (0) target = $region9
  $region8: #{multicubenet_forward.20} parent=0 // pred_region
    _
  $region9: #{multicubenet_forward.20} parent=0 // pred_fallthru
    _
  // Predicated region
  $region10: #{multicubenet_forward.20} parent=0 // pred_check
    _
  $region11: #{multicubenet_forward.20} parent=0 // pred_check_branch
    %14 = sbr.rel (0) target = $region13
  $region12: #{multicubenet_forward.20} parent=0 // pred_region
    _
  $region13: #{multicubenet_forward.20} parent=0 // pred_fallthru
    _
  // Predicated region
  $region14: #{multicubenet_forward.20} parent=0 // pred_check
    _
  $region15: #{multicubenet_forward.20} parent=0 // pred_check_branch
    %16 = sbr.rel (0) target = $region17
  $region16: #{multicubenet_forward.20} parent=0 // pred_region
    _
  $region17: #{multicubenet_forward.20} parent=0 // pred_fallthru
    _
  %v18 = vld [vmem:[%s1] sm:$0xf]
  %v19 = vld [vmem:[%s0] sm:$0xf]
  %v20 = vld [vmem:[%s0 + $0x4] sm:$0xf]
  %v21 = vld [vmem:[%s0 + $0x8] sm:$0xf]
  %v22 = vld [vmem:[%s0 + $0xc] sm:$0xf]
  %v23 = vld [vmem:[%s0 + $0x10] sm:$0xf]
  %v24 = vld [vmem:[%s0 + $0x14] sm:$0xf]
  %v25 = vld [vmem:[%s0 + $0x18] sm:$0xf]
  %v26 = vld [vmem:[%s0 + $0x1c] sm:$0xf]
  %v27 = vld [vmem:[%s0 + $0x20] sm:$0xf]
  %v28 = vld [vmem:[%s0 + $0x24] sm:$0xf]
  %v29 = vld [vmem:[%s0 + $0x28] sm:$0xf]
  %v30 = vld [vmem:[%s0 + $0x2c] sm:$0xf]
  %v31 = vld [vmem:[%s0 + $0x30] sm:$0xf]
  %v32 = vld [vmem:[%s0 + $0x34] sm:$0xf]
  %v33 = vld [vmem:[%s0 + $0x38] sm:$0xf]
  %v34 = vld [vmem:[%s0 + $0x3c] sm:$0xf]
  %v35 = vld [vmem:[%s0 + $0x40] sm:$0xf]
  %v36 = vld [vmem:[%s0 + $0x44] sm:$0xf]
  %v37 = vld [vmem:[%s0 + $0x48] sm:$0xf]
  %v38 = vld [vmem:[%s0 + $0x4c] sm:$0xf]
  %v39 = vld [vmem:[%s0 + $0x50] sm:$0xf]
  %v40 = vld [vmem:[%s0 + $0x54] sm:$0xf]
  %v41 = vld [vmem:[%s0 + $0x58] sm:$0xf]
  %v42 = vld [vmem:[%s0 + $0x5c] sm:$0x7]
  %v45 = vunpack.c.l.s4 1983009808
  %v46 = vunpack.c.0.s8 %v45
  %v47 = vlaneseq
  %v48 = vshrl.u32 %v47, 7
  %v49 = vsub.s32 %v46, %v48
  %v50 = vrot.slane %v18, %v49
  %v51 = vcombine.high %v50, %v50
  %v77 = vunpack.c.l.b16 %v19
  %v78 = vunpack.c.l.b16 %v20
  %v79 = vunpack.c.l.b16 %v21
  %v80 = vunpack.c.l.b16 %v22
  %v81 = vunpack.c.l.b16 %v23
  %v82 = vunpack.c.l.b16 %v24
  %v83 = vunpack.c.l.b16 %v25
  %v84 = vunpack.c.l.b16 %v26
  %v85 = vunpack.c.l.b16 %v27
  %v86 = vunpack.c.l.b16 %v28
  %v87 = vunpack.c.l.b16 %v29
  %v88 = vunpack.c.l.b16 %v30
  %v89 = vunpack.c.l.b16 %v31
  %v90 = vunpack.c.l.b16 %v32
  %v91 = vunpack.c.l.b16 %v33
  %v92 = vunpack.c.l.b16 %v34
  %v93 = vunpack.c.l.b16 %v35
  %v94 = vunpack.c.l.b16 %v36
  %v95 = vunpack.c.l.b16 %v37
  %v96 = vunpack.c.l.b16 %v38
  %v97 = vunpack.c.l.b16 %v39
  %v98 = vunpack.c.l.b16 %v40
  %v99 = vunpack.c.l.b16 %v41
  %v100 = vunpack.c.l.b16 %v42
  %v101 = vpack.c.b16 %v78, %v77
  %v102 = vpack.c.b16 %v80, %v79
  %v103 = vpack.c.b16 %v82, %v81
  %v104 = vpack.c.b16 %v84, %v83
  %v105 = vpack.c.b16 %v86, %v85
  %v106 = vpack.c.b16 %v88, %v87
  %v107 = vpack.c.b16 %v90, %v89
  %v108 = vpack.c.b16 %v92, %v91
  %v109 = vpack.c.b16 %v94, %v93
  %v110 = vpack.c.b16 %v96, %v95
  %v111 = vpack.c.b16 %v98, %v97
  %v112 = vpack.c.b16 %v100, %v99
  %vm124 = vcmask 498688
  %v126 = vsel %vm124, %v51, 0
  %vm128 = vcmask 1045504
  %vm129 = vcmask 1046528
  %v130 = vsel %vm128, 4294967295, 65535
  %v131 = vsel %vm129, %v130, 0
  %v133 = vand.u32 %v112, %v131
  %135 = vmatprep.subr.bf16.mxu0 0
  %136 = vmatpush1.bf16.msra.mxu0 %v101
  %137 = vmatprep.subr.bf16.mxu0 0
  %138 = vmatpush1.bf16.msra.mxu0 %v102
  %139 = vmatprep.subr.bf16.mxu0 0
  %140 = vmatpush1.bf16.msra.mxu0 %v103
  %141 = vmatprep.subr.bf16.mxu0 0
  %142 = vmatpush1.bf16.msra.mxu0 %v104
  %143 = vmatprep.subr.bf16.mxu0 0
  %144 = vmatpush1.bf16.msra.mxu0 %v105
  %145 = vmatprep.subr.bf16.mxu0 0
  %146 = vmatpush1.bf16.msra.mxu0 %v106
  %147 = vmatprep.subr.bf16.mxu0 0
  %148 = vmatpush1.bf16.msra.mxu0 %v107
  %149 = vmatprep.subr.bf16.mxu0 0
  %150 = vmatpush1.bf16.msra.mxu0 %v108
  %151 = vmatprep.subr.bf16.mxu0 0
  %152 = vmatpush1.bf16.msra.mxu0 %v109
  %153 = vmatprep.subr.bf16.mxu0 0
  %154 = vmatpush1.bf16.msra.mxu0 %v110
  %155 = vmatprep.subr.bf16.mxu0 0
  %156 = vmatpush1.bf16.msra.mxu0 %v111
  %157 = vmatprep.subr.bf16.mxu0 0
  %158 = vmatpush1.bf16.msra.mxu0 %v133
  %159 = vmatprep.subr.bf16.mxu0 0
  %160 = vmatpush1.bf16.msra.mxu0 0
  %161 = vmatprep.subr.bf16.mxu0 0
  %162 = vmatpush1.bf16.msra.mxu0 0
  %163 = vmatprep.subr.bf16.mxu0 0
  %164 = vmatpush1.bf16.msra.mxu0 0
  %165 = vmatprep.subr.bf16.mxu0 0
  %166 = vmatpush1.bf16.msra.mxu0 0
  %167 = vmatprep.mubr.bf16.mxu0 %v126
  %168 = vmatmul.mubr.bf16.gmra.mrb[0].mxu0 %v50
  %v169 = vpop.f32.mrb[0].mxu0
  %v170 = vadd.f32 0.0, %v169
  %v171 = vpop.f32.mrb[0].mxu0
  %v172 = vpop.f32.mrb[0].mxu0
  %v173 = vpop.f32.mrb[0].mxu0
  %174 = vdwg.mxu0
  %vm175 = vcmask 1043456
  %v176 = vsel %vm175, %v170, 0.0
  %177 = vadd.xlane.f32.xlu0 %v176
  %v178 = vpop.xlane.xlu0 %177
  %v179 = vrcp.pop 128.0
  %v180 = vmul.f32 %v178, %v179
  %v181 = vsub.f32 %v170, %v180
  %v182 = vmul.f32 %v181, %v181
  %v183 = vsel %vm175, %v182, 0.0
  %184 = vadd.xlane.f32.xlu0 %v183
  %v185 = vpop.xlane.xlu0 %184
  %v186 = vmul.f32 %v185, %v179
  %v187 = vadd.f32 %v186, 1e-05
  %v188 = vrsqrt.pop %v187
  %v189 = vld [vmem:[%s2] sm:$0xf]
  %v190 = vmul.f32 %v188, %v189
  %192 = vset.pattern.permute.xlu0 0
  %193 = vperm.xlu0 %192, %v190
  %v194 = vpop.permute.xlu0 %193
  %v196 = vmul.f32 %v181, %v194
  %v197 = vld [vmem:[%s3] sm:$0xf]
  %199 = vset.pattern.permute.xlu0 0
  %200 = vperm.xlu0 %199, %v197
  %v201 = vpop.permute.xlu0 %200
  %v203 = vadd.f32 %v196, %v201
  %v204 = vmax.f32 %v203, 0.0
  %205 = vst [vmem:[%s4] sm:$0xf] %v204
  // Predicated region
  $region18: #{multicubenet_forward.20} parent=0 // pred_check
    _
  $region19: #{multicubenet_forward.20} parent=0 // pred_check_branch
    %207 = sbr.rel (0) target = $region21
  $region20: #{multicubenet_forward.20} parent=0 // pred_region
    _
  $region21: #{multicubenet_forward.20} parent=0 // pred_fallthru
    _
  // Predicated region
  $region22: #{multicubenet_forward.20} parent=0 // pred_check
    _
  $region23: #{multicubenet_forward.20} parent=0 // pred_check_branch
    %209 = sbr.rel (0) target = $region25
  $region24: #{multicubenet_forward.20} parent=0 // pred_region
    _
  $region25: #{multicubenet_forward.20} parent=0 // pred_fallthru
    _

// kernel: multicubenet_forward.24
$region0: #{multicubenet_forward.24}
  #allocation0 [shape = 'u32[]', space=smem, size = 0x4, offset = 0x4, fixed_abs, tag = 'smem constant byte address 0x4 - core index']
  #allocation1 [shape = 'u32[144,128]{1,0:T(1,128)}', space=vmem, size = 0x12000, scoped, tag = 'internal scratch']
  %s0 = inlined_call_operand.vmem [shape: bf16[189,16], index: 0, kind: input, shape index: {}]
  %s1 = inlined_call_operand.vmem [shape: bf16[8,189], index: 1, kind: input, shape index: {}]
  %s2 = inlined_call_operand.vmem [shape: f32[8,1], index: 2, kind: input, shape index: {}]
  %s3 = inlined_call_operand.vmem [shape: f32[8,1], index: 3, kind: input, shape index: {}]
  %s4 = inlined_call_operand.vmem [shape: f32[8,16], index: 4, kind: output, shape index: {}]
  %s5 = sld [smem:[#allocation0]]
  $region26: #{multicubenet_forward.24} parent=0
    _
  %s7 = ssub.s32 1, %s5
  %s8 = scalar_select 0, %s7, %s5
  // Predicated region
  $region2: #{multicubenet_forward.24} parent=0 // pred_check
    _
  $region3: #{multicubenet_forward.24} parent=0 // pred_check_branch
    %10 = sbr.rel (0) target = $region5
  $region4: #{multicubenet_forward.24} parent=0 // pred_region
    _
  $region5: #{multicubenet_forward.24} parent=0 // pred_fallthru
    _
  // Predicated region
  $region6: #{multicubenet_forward.24} parent=0 // pred_check
    _
  $region7: #{multicubenet_forward.24} parent=0 // pred_check_branch
    %12 = sbr.rel (0) target = $region9
  $region8: #{multicubenet_forward.24} parent=0 // pred_region
    _
  $region9: #{multicubenet_forward.24} parent=0 // pred_fallthru
    _
  // Predicated region
  $region10: #{multicubenet_forward.24} parent=0 // pred_check
    _
  $region11: #{multicubenet_forward.24} parent=0 // pred_check_branch
    %14 = sbr.rel (0) target = $region13
  $region12: #{multicubenet_forward.24} parent=0 // pred_region
    _
  $region13: #{multicubenet_forward.24} parent=0 // pred_fallthru
    _
  // Predicated region
  $region14: #{multicubenet_forward.24} parent=0 // pred_check
    _
  $region15: #{multicubenet_forward.24} parent=0 // pred_check_branch
    %16 = sbr.rel (0) target = $region17
  $region16: #{multicubenet_forward.24} parent=0 // pred_region
    _
  $region17: #{multicubenet_forward.24} parent=0 // pred_fallthru
    _
  %v18 = vld [vmem:[%s1] sm:$0xff]
  %v19 = vld [vmem:[%s0] sm:$0xf]
  %v20 = vld [vmem:[%s0 + $0x4] sm:$0xf]
  %v21 = vld [vmem:[%s0 + $0x8] sm:$0xf]
  %v22 = vld [vmem:[%s0 + $0xc] sm:$0xf]
  %v23 = vld [vmem:[%s0 + $0x10] sm:$0xf]
  %v24 = vld [vmem:[%s0 + $0x14] sm:$0xf]
  %v25 = vld [vmem:[%s0 + $0x18] sm:$0xf]
  %v26 = vld [vmem:[%s0 + $0x1c] sm:$0xf]
  %v27 = vld [vmem:[%s0 + $0x20] sm:$0xf]
  %v28 = vld [vmem:[%s0 + $0x24] sm:$0xf]
  %v29 = vld [vmem:[%s0 + $0x28] sm:$0xf]
  %v30 = vld [vmem:[%s0 + $0x2c] sm:$0xf]
  %v31 = vld [vmem:[%s0 + $0x30] sm:$0xf]
  %v32 = vld [vmem:[%s0 + $0x34] sm:$0xf]
  %v33 = vld [vmem:[%s0 + $0x38] sm:$0xf]
  %v34 = vld [vmem:[%s0 + $0x3c] sm:$0xf]
  %v35 = vld [vmem:[%s0 + $0x40] sm:$0xf]
  %v36 = vld [vmem:[%s0 + $0x44] sm:$0xf]
  %v37 = vld [vmem:[%s0 + $0x48] sm:$0xf]
  %v38 = vld [vmem:[%s0 + $0x4c] sm:$0xf]
  %v39 = vld [vmem:[%s0 + $0x50] sm:$0xf]
  %v40 = vld [vmem:[%s0 + $0x54] sm:$0xf]
  %v41 = vld [vmem:[%s0 + $0x58] sm:$0xf]
  %v42 = vld [vmem:[%s0 + $0x5c] sm:$0x7]
  %v44 = vunpack.c.l.b16 %v18
  %v45 = vunpack.c.h.b16 %v18
  %v46 = vpack.c.b16 %v44, %v44
  %v47 = vpack.c.b16 %v45, %v45
  %v73 = vunpack.c.l.b16 %v19
  %v74 = vunpack.c.l.b16 %v20
  %v75 = vunpack.c.l.b16 %v21
  %v76 = vunpack.c.l.b16 %v22
  %v77 = vunpack.c.l.b16 %v23
  %v78 = vunpack.c.l.b16 %v24
  %v79 = vunpack.c.l.b16 %v25
  %v80 = vunpack.c.l.b16 %v26
  %v81 = vunpack.c.l.b16 %v27
  %v82 = vunpack.c.l.b16 %v28
  %v83 = vunpack.c.l.b16 %v29
  %v84 = vunpack.c.l.b16 %v30
  %v85 = vunpack.c.l.b16 %v31
  %v86 = vunpack.c.l.b16 %v32
  %v87 = vunpack.c.l.b16 %v33
  %v88 = vunpack.c.l.b16 %v34
  %v89 = vunpack.c.l.b16 %v35
  %v90 = vunpack.c.l.b16 %v36
  %v91 = vunpack.c.l.b16 %v37
  %v92 = vunpack.c.l.b16 %v38
  %v93 = vunpack.c.l.b16 %v39
  %v94 = vunpack.c.l.b16 %v40
  %v95 = vunpack.c.l.b16 %v41
  %v96 = vunpack.c.l.b16 %v42
  %v97 = vpack.c.b16 %v74, %v73
  %v98 = vpack.c.b16 %v76, %v75
  %v99 = vpack.c.b16 %v78, %v77
  %v100 = vpack.c.b16 %v80, %v79
  %v101 = vpack.c.b16 %v82, %v81
  %v102 = vpack.c.b16 %v84, %v83
  %v103 = vpack.c.b16 %v86, %v85
  %v104 = vpack.c.b16 %v88, %v87
  %v105 = vpack.c.b16 %v90, %v89
  %v106 = vpack.c.b16 %v92, %v91
  %v107 = vpack.c.b16 %v94, %v93
  %v108 = vpack.c.b16 %v96, %v95
  %vm120 = vcmask 498688
  %v122 = vsel %vm120, %v47, 0
  %vm124 = vcmask 1045504
  %vm125 = vcmask 1046528
  %v126 = vsel %vm124, 4294967295, 65535
  %v127 = vsel %vm125, %v126, 0
  %v129 = vand.u32 %v108, %v127
  %131 = vmatprep.subr.bf16.mxu0 0
  %132 = vmatpush1.bf16.msra.mxu0 %v97
  %133 = vmatprep.subr.bf16.mxu0 0
  %134 = vmatpush1.bf16.msra.mxu0 %v98
  %135 = vmatprep.subr.bf16.mxu0 0
  %136 = vmatpush1.bf16.msra.mxu0 %v99
  %137 = vmatprep.subr.bf16.mxu0 0
  %138 = vmatpush1.bf16.msra.mxu0 %v100
  %139 = vmatprep.subr.bf16.mxu0 0
  %140 = vmatpush1.bf16.msra.mxu0 %v101
  %141 = vmatprep.subr.bf16.mxu0 0
  %142 = vmatpush1.bf16.msra.mxu0 %v102
  %143 = vmatprep.subr.bf16.mxu0 0
  %144 = vmatpush1.bf16.msra.mxu0 %v103
  %145 = vmatprep.subr.bf16.mxu0 0
  %146 = vmatpush1.bf16.msra.mxu0 %v104
  %147 = vmatprep.subr.bf16.mxu0 0
  %148 = vmatpush1.bf16.msra.mxu0 %v105
  %149 = vmatprep.subr.bf16.mxu0 0
  %150 = vmatpush1.bf16.msra.mxu0 %v106
  %151 = vmatprep.subr.bf16.mxu0 0
  %152 = vmatpush1.bf16.msra.mxu0 %v107
  %153 = vmatprep.subr.bf16.mxu0 0
  %154 = vmatpush1.bf16.msra.mxu0 %v129
  %155 = vmatprep.subr.bf16.mxu0 0
  %156 = vmatpush1.bf16.msra.mxu0 0
  %157 = vmatprep.subr.bf16.mxu0 0
  %158 = vmatpush1.bf16.msra.mxu0 0
  %159 = vmatprep.subr.bf16.mxu0 0
  %160 = vmatpush1.bf16.msra.mxu0 0
  %161 = vmatprep.subr.bf16.mxu0 0
  %162 = vmatpush1.bf16.msra.mxu0 0
  %163 = vmatprep.mubr.bf16.mxu0 %v122
  %164 = vmatmul.mubr.bf16.gmra.mrb[0].mxu0 %v46
  %v165 = vpop.f32.mrb[0].mxu0
  %v166 = vadd.f32 0.0, %v165
  %v167 = vpop.f32.mrb[0].mxu0
  %v168 = vpop.f32.mrb[0].mxu0
  %v169 = vpop.f32.mrb[0].mxu0
  %170 = vdwg.mxu0
  %vm171 = vcmask 130048
  %v172 = vsel %vm171, %v166, 0.0
  %173 = vadd.xlane.f32.xlu0 %v172
  %v174 = vpop.xlane.xlu0 %173
  %v175 = vrcp.pop 16.0
  %v176 = vmul.f32 %v174, %v175
  %v177 = vsub.f32 %v166, %v176
  %v178 = vmul.f32 %v177, %v177
  %v179 = vsel %vm171, %v178, 0.0
  %180 = vadd.xlane.f32.xlu0 %v179
  %v181 = vpop.xlane.xlu0 %180
  %v182 = vmul.f32 %v181, %v175
  %v183 = vadd.f32 %v182, 1e-05
  %v184 = vrsqrt.pop %v183
  %v185 = vld [vmem:[%s2] sm:$0xff]
  %v186 = vmul.f32 %v184, %v185
  %188 = vset.pattern.permute.xlu0 0
  %189 = vperm.xlu0 %188, %v186
  %v190 = vpop.permute.xlu0 %189
  %v192 = vmul.f32 %v177, %v190
  %v193 = vld [vmem:[%s3] sm:$0xff]
  %195 = vset.pattern.permute.xlu0 0
  %196 = vperm.xlu0 %195, %v193
  %v197 = vpop.permute.xlu0 %196
  %v199 = vadd.f32 %v192, %v197
  %v200 = vmax.f32 %v199, 0.0
  %201 = vst.msk [vmem:[%s4] sm:$0xff] %vm171, %v200
  // Predicated region
  $region18: #{multicubenet_forward.24} parent=0 // pred_check
    _
  $region19: #{multicubenet_forward.24} parent=0 // pred_check_branch
    %203 = sbr.rel (0) target = $region21
  $region20: #{multicubenet_forward.24} parent=0 // pred_region
    _
  $region21: #{multicubenet_forward.24} parent=0 // pred_fallthru
    _
  // Predicated region
  $region22: #{multicubenet_forward.24} parent=0 // pred_check
    _
  $region23: #{multicubenet_forward.24} parent=0 // pred_check_branch
    %205 = sbr.rel (0) target = $region25
  $region24: #{multicubenet_forward.24} parent=0 // pred_region
    _
  $region25: #{multicubenet_forward.24} parent=0 // pred_fallthru
    _

// kernel: multicubenet_forward.27
$region0: #{multicubenet_forward.27}
  #allocation0 [shape = 'u32[]', space=smem, size = 0x4, offset = 0x4, fixed_abs, tag = 'smem constant byte address 0x4 - core index']
  #allocation1 [shape = 'u32[144,128]{1,0:T(1,128)}', space=vmem, size = 0x12000, scoped, tag = 'internal scratch']
  %s0 = inlined_call_operand.vmem [shape: bf16[297,2], index: 0, kind: input, shape index: {}]
  %s1 = inlined_call_operand.vmem [shape: bf16[8,297], index: 1, kind: input, shape index: {}]
  %s2 = inlined_call_operand.vmem [shape: f32[8,1], index: 2, kind: input, shape index: {}]
  %s3 = inlined_call_operand.vmem [shape: f32[8,1], index: 3, kind: input, shape index: {}]
  %s4 = inlined_call_operand.vmem [shape: f32[8,2], index: 4, kind: output, shape index: {}]
  %s5 = sld [smem:[#allocation0]]
  $region26: #{multicubenet_forward.27} parent=0
    _
  %s7 = ssub.s32 1, %s5
  %s8 = scalar_select 0, %s7, %s5
  // Predicated region
  $region2: #{multicubenet_forward.27} parent=0 // pred_check
    _
  $region3: #{multicubenet_forward.27} parent=0 // pred_check_branch
    %10 = sbr.rel (0) target = $region5
  $region4: #{multicubenet_forward.27} parent=0 // pred_region
    _
  $region5: #{multicubenet_forward.27} parent=0 // pred_fallthru
    _
  // Predicated region
  $region6: #{multicubenet_forward.27} parent=0 // pred_check
    _
  $region7: #{multicubenet_forward.27} parent=0 // pred_check_branch
    %12 = sbr.rel (0) target = $region9
  $region8: #{multicubenet_forward.27} parent=0 // pred_region
    _
  $region9: #{multicubenet_forward.27} parent=0 // pred_fallthru
    _
  // Predicated region
  $region10: #{multicubenet_forward.27} parent=0 // pred_check
    _
  $region11: #{multicubenet_forward.27} parent=0 // pred_check_branch
    %14 = sbr.rel (0) target = $region13
  $region12: #{multicubenet_forward.27} parent=0 // pred_region
    _
  $region13: #{multicubenet_forward.27} parent=0 // pred_fallthru
    _
  // Predicated region
  $region14: #{multicubenet_forward.27} parent=0 // pred_check
    _
  $region15: #{multicubenet_forward.27} parent=0 // pred_check_branch
    %16 = sbr.rel (0) target = $region17
  $region16: #{multicubenet_forward.27} parent=0 // pred_region
    _
  $region17: #{multicubenet_forward.27} parent=0 // pred_fallthru
    _
  %v18 = vld [vmem:[%s1] sm:$0xff]
  %v19 = vld [vmem:[%s1 + $0x8] sm:$0xf]
  %v20 = vld [vmem:[%s0] sm:$0xf]
  %v21 = vld [vmem:[%s0 + $0x4] sm:$0xf]
  %v22 = vld [vmem:[%s0 + $0x8] sm:$0xf]
  %v23 = vld [vmem:[%s0 + $0xc] sm:$0xf]
  %v24 = vld [vmem:[%s0 + $0x10] sm:$0xf]
  %v25 = vld [vmem:[%s0 + $0x14] sm:$0xf]
  %v26 = vld [vmem:[%s0 + $0x18] sm:$0xf]
  %v27 = vld [vmem:[%s0 + $0x1c] sm:$0xf]
  %v28 = vld [vmem:[%s0 + $0x20] sm:$0xf]
  %v29 = vld [vmem:[%s0 + $0x24] sm:$0xf]
  %v30 = vld [vmem:[%s0 + $0x28] sm:$0xf]
  %v31 = vld [vmem:[%s0 + $0x2c] sm:$0xf]
  %v32 = vld [vmem:[%s0 + $0x30] sm:$0xf]
  %v33 = vld [vmem:[%s0 + $0x34] sm:$0xf]
  %v34 = vld [vmem:[%s0 + $0x38] sm:$0xf]
  %v35 = vld [vmem:[%s0 + $0x3c] sm:$0xf]
  %v36 = vld [vmem:[%s0 + $0x40] sm:$0xf]
  %v37 = vld [vmem:[%s0 + $0x44] sm:$0xf]
  %v38 = vld [vmem:[%s0 + $0x48] sm:$0xf]
  %v39 = vld [vmem:[%s0 + $0x4c] sm:$0xf]
  %v40 = vld [vmem:[%s0 + $0x50] sm:$0xf]
  %v41 = vld [vmem:[%s0 + $0x54] sm:$0xf]
  %v42 = vld [vmem:[%s0 + $0x58] sm:$0xf]
  %v43 = vld [vmem:[%s0 + $0x5c] sm:$0xf]
  %v44 = vld [vmem:[%s0 + $0x60] sm:$0xf]
  %v45 = vld [vmem:[%s0 + $0x64] sm:$0xf]
  %v46 = vld [vmem:[%s0 + $0x68] sm:$0xf]
  %v47 = vld [vmem:[%s0 + $0x6c] sm:$0xf]
  %v48 = vld [vmem:[%s0 + $0x70] sm:$0xf]
  %v49 = vld [vmem:[%s0 + $0x74] sm:$0xf]
  %v50 = vld [vmem:[%s0 + $0x78] sm:$0xf]
  %v51 = vld [vmem:[%s0 + $0x7c] sm:$0xf]
  %v52 = vld [vmem:[%s0 + $0x80] sm:$0xf]
  %v53 = vld [vmem:[%s0 + $0x84] sm:$0xf]
  %v54 = vld [vmem:[%s0 + $0x88] sm:$0xf]
  %v55 = vld [vmem:[%s0 + $0x8c] sm:$0xf]
  %v56 = vld [vmem:[%s0 + $0x90] sm:$0xf]
  %v57 = vld [vmem:[%s0 + $0x94] sm:$0x1]
  %v60 = vunpack.c.l.b16 %v18
  %v61 = vunpack.c.h.b16 %v18
  %v62 = vunpack.c.l.b16 %v19
  %v63 = vpack.c.b16 %v60, %v60
  %v64 = vpack.c.b16 %v61, %v61
  %v65 = vpack.c.b16 %v62, %v62
  %v106 = vunpack.c.l.b16 %v20
  %v107 = vunpack.c.l.b16 %v21
  %v108 = vunpack.c.l.b16 %v22
  %v109 = vunpack.c.l.b16 %v23
  %v110 = vunpack.c.l.b16 %v24
  %v111 = vunpack.c.l.b16 %v25
  %v112 = vunpack.c.l.b16 %v26
  %v113 = vunpack.c.l.b16 %v27
  %v114 = vunpack.c.l.b16 %v28
  %v115 = vunpack.c.l.b16 %v29
  %v116 = vunpack.c.l.b16 %v30
  %v117 = vunpack.c.l.b16 %v31
  %v118 = vunpack.c.l.b16 %v32
  %v119 = vunpack.c.l.b16 %v33
  %v120 = vunpack.c.l.b16 %v34
  %v121 = vunpack.c.l.b16 %v35
  %v122 = vunpack.c.l.b16 %v36
  %v123 = vunpack.c.l.b16 %v37
  %v124 = vunpack.c.l.b16 %v38
  %v125 = vunpack.c.l.b16 %v39
  %v126 = vunpack.c.l.b16 %v40
  %v127 = vunpack.c.l.b16 %v41
  %v128 = vunpack.c.l.b16 %v42
  %v129 = vunpack.c.l.b16 %v43
  %v130 = vunpack.c.l.b16 %v44
  %v131 = vunpack.c.l.b16 %v45
  %v132 = vunpack.c.l.b16 %v46
  %v133 = vunpack.c.l.b16 %v47
  %v134 = vunpack.c.l.b16 %v48
  %v135 = vunpack.c.l.b16 %v49
  %v136 = vunpack.c.l.b16 %v50
  %v137 = vunpack.c.l.b16 %v51
  %v138 = vunpack.c.l.b16 %v52
  %v139 = vunpack.c.l.b16 %v53
  %v140 = vunpack.c.l.b16 %v54
  %v141 = vunpack.c.l.b16 %v55
  %v142 = vunpack.c.l.b16 %v56
  %v143 = vunpack.c.l.b16 %v57
  %v144 = vpack.c.b16 %v107, %v106
  %v145 = vpack.c.b16 %v109, %v108
  %v146 = vpack.c.b16 %v111, %v110
  %v147 = vpack.c.b16 %v113, %v112
  %v148 = vpack.c.b16 %v115, %v114
  %v149 = vpack.c.b16 %v117, %v116
  %v150 = vpack.c.b16 %v119, %v118
  %v151 = vpack.c.b16 %v121, %v120
  %v152 = vpack.c.b16 %v123, %v122
  %v153 = vpack.c.b16 %v125, %v124
  %v154 = vpack.c.b16 %v127, %v126
  %v155 = vpack.c.b16 %v129, %v128
  %v156 = vpack.c.b16 %v131, %v130
  %v157 = vpack.c.b16 %v133, %v132
  %v158 = vpack.c.b16 %v135, %v134
  %v159 = vpack.c.b16 %v137, %v136
  %v160 = vpack.c.b16 %v139, %v138
  %v161 = vpack.c.b16 %v141, %v140
  %v162 = vpack.c.b16 %v143, %v142
  %vm181 = vcmask 334848
  %v183 = vsel %vm181, %v65, 0
  %vm185 = vcmask 1043456
  %vm186 = vcmask 1044480
  %v187 = vsel %vm185, 4294967295, 65535
  %v188 = vsel %vm186, %v187, 0
  %v190 = vand.u32 %v162, %v188
  %192 = vmatprep.subr.bf16.mxu0 0
  %193 = vmatpush1.bf16.msra.mxu0 %v144
  %194 = vmatprep.subr.bf16.mxu0 0
  %195 = vmatpush1.bf16.msra.mxu0 %v145
  %196 = vmatprep.subr.bf16.mxu0 0
  %197 = vmatpush1.bf16.msra.mxu0 %v146
  %198 = vmatprep.subr.bf16.mxu0 0
  %199 = vmatpush1.bf16.msra.mxu0 %v147
  %200 = vmatprep.subr.bf16.mxu0 0
  %201 = vmatpush1.bf16.msra.mxu0 %v148
  %202 = vmatprep.subr.bf16.mxu0 0
  %203 = vmatpush1.bf16.msra.mxu0 %v149
  %204 = vmatprep.subr.bf16.mxu0 0
  %205 = vmatpush1.bf16.msra.mxu0 %v150
  %206 = vmatprep.subr.bf16.mxu0 0
  %207 = vmatpush1.bf16.msra.mxu0 %v151
  %208 = vmatprep.subr.bf16.mxu0 0
  %209 = vmatpush1.bf16.msra.mxu0 %v152
  %210 = vmatprep.subr.bf16.mxu0 0
  %211 = vmatpush1.bf16.msra.mxu0 %v153
  %212 = vmatprep.subr.bf16.mxu0 0
  %213 = vmatpush1.bf16.msra.mxu0 %v154
  %214 = vmatprep.subr.bf16.mxu0 0
  %215 = vmatpush1.bf16.msra.mxu0 %v155
  %216 = vmatprep.subr.bf16.mxu0 0
  %217 = vmatpush1.bf16.msra.mxu0 %v156
  %218 = vmatprep.subr.bf16.mxu0 0
  %219 = vmatpush1.bf16.msra.mxu0 %v157
  %220 = vmatprep.subr.bf16.mxu0 0
  %221 = vmatpush1.bf16.msra.mxu0 %v158
  %222 = vmatprep.subr.bf16.mxu0 0
  %223 = vmatpush1.bf16.msra.mxu0 %v159
  %224 = vmatprep.mubr.bf16.mxu0 %v64
  %225 = vmatmul.mubr.bf16.gmra.mrb[0].mxu0 %v63
  %v226 = vpop.f32.mrb[0].mxu0
  %v227 = vadd.f32 0.0, %v226
  %v228 = vpop.f32.mrb[0].mxu0
  %v229 = vpop.f32.mrb[0].mxu0
  %v230 = vpop.f32.mrb[0].mxu0
  %231 = vdwg.mxu0
  %232 = vmatprep.subr.bf16.mxu0 0
  %233 = vmatpush1.bf16.msra.mxu0 %v160
  %234 = vmatprep.subr.bf16.mxu0 0
  %235 = vmatpush1.bf16.msra.mxu0 %v161
  %236 = vmatprep.subr.bf16.mxu0 0
  %237 = vmatpush1.bf16.msra.mxu0 %v190
  %238 = vmatprep.subr.bf16.mxu0 0
  %239 = vmatpush1.bf16.msra.mxu0 0
  %240 = vmatprep.subr.bf16.mxu0 0
  %241 = vmatpush1.bf16.msra.mxu0 0
  %242 = vmatprep.subr.bf16.mxu0 0
  %243 = vmatpush1.bf16.msra.mxu0 0
  %244 = vmatprep.subr.bf16.mxu0 0
  %245 = vmatpush1.bf16.msra.mxu0 0
  %246 = vmatprep.subr.bf16.mxu0 0
  %247 = vmatpush1.bf16.msra.mxu0 0
  %248 = vmatprep.subr.bf16.mxu0 0
  %249 = vmatpush1.bf16.msra.mxu0 0
  %250 = vmatprep.subr.bf16.mxu0 0
  %251 = vmatpush1.bf16.msra.mxu0 0
  %252 = vmatprep.subr.bf16.mxu0 0
  %253 = vmatpush1.bf16.msra.mxu0 0
  %254 = vmatprep.subr.bf16.mxu0 0
  %255 = vmatpush1.bf16.msra.mxu0 0
  %256 = vmatprep.subr.bf16.mxu0 0
  %257 = vmatpush1.bf16.msra.mxu0 0
  %258 = vmatprep.subr.bf16.mxu0 0
  %259 = vmatpush1.bf16.msra.mxu0 0
  %260 = vmatprep.subr.bf16.mxu0 0
  %261 = vmatpush1.bf16.msra.mxu0 0
  %262 = vmatprep.subr.bf16.mxu0 0
  %263 = vmatpush1.bf16.msra.mxu0 0
  %264 = vmatprep.mubr.bf16.mxu0 0
  %265 = vmatmul.mubr.bf16.gmra.mrb[0].mxu0 %v183
  %v266 = vpop.f32.mrb[0].mxu0
  %v267 = vadd.f32 %v227, %v266
  %v268 = vpop.f32.mrb[0].mxu0
  %v269 = vpop.f32.mrb[0].mxu0
  %v270 = vpop.f32.mrb[0].mxu0
  %271 = vdwg.mxu0
  %vm272 = vcmask 15360
  %v273 = vsel %vm272, %v267, 0.0
  %274 = vadd.xlane.f32.xlu0 %v273
  %v275 = vpop.xlane.xlu0 %274
  %v276 = vrcp.pop 2.0
  %v277 = vmul.f32 %v275, %v276
  %v278 = vsub.f32 %v267, %v277
  %v279 = vmul.f32 %v278, %v278
  %v280 = vsel %vm272, %v279, 0.0
  %281 = vadd.xlane.f32.xlu0 %v280
  %v282 = vpop.xlane.xlu0 %281
  %v283 = vmul.f32 %v282, %v276
  %v284 = vadd.f32 %v283, 1e-05
  %v285 = vrsqrt.pop %v284
  %v286 = vld [vmem:[%s2] sm:$0xff]
  %v287 = vmul.f32 %v285, %v286
  %289 = vset.pattern.permute.xlu0 0
  %290 = vperm.xlu0 %289, %v287
  %v291 = vpop.permute.xlu0 %290
  %v293 = vmul.f32 %v278, %v291
  %v294 = vld [vmem:[%s3] sm:$0xff]
  %296 = vset.pattern.permute.xlu0 0
  %297 = vperm.xlu0 %296, %v294
  %v298 = vpop.permute.xlu0 %297
  %v300 = vadd.f32 %v293, %v298
  %v301 = vmax.f32 %v300, 0.0
  %302 = vst.msk [vmem:[%s4] sm:$0xff] %vm272, %v301
  // Predicated region
  $region18: #{multicubenet_forward.27} parent=0 // pred_check
    _
  $region19: #{multicubenet_forward.27} parent=0 // pred_check_branch
    %304 = sbr.rel (0) target = $region21
  $region20: #{multicubenet_forward.27} parent=0 // pred_region
    _
  $region21: #{multicubenet_forward.27} parent=0 // pred_fallthru
    _
  // Predicated region
  $region22: #{multicubenet_forward.27} parent=0 // pred_check
    _
  $region23: #{multicubenet_forward.27} parent=0 // pred_check_branch
    %306 = sbr.rel (0) target = $region25
  $region24: #{multicubenet_forward.27} parent=0 // pred_region
    _
  $region25: #{multicubenet_forward.27} parent=0 // pred_fallthru
    _

// kernel: multicubenet_forward.29
$region0: #{multicubenet_forward.29}
  #allocation0 [shape = 'u32[]', space=smem, size = 0x4, offset = 0x4, fixed_abs, tag = 'smem constant byte address 0x4 - core index']
  #allocation1 [shape = 'u32[144,128]{1,0:T(1,128)}', space=vmem, size = 0x12000, scoped, tag = 'internal scratch']
  %s0 = inlined_call_operand.vmem [shape: bf16[297,2], index: 0, kind: input, shape index: {}]
  %s1 = inlined_call_operand.vmem [shape: bf16[8,297], index: 1, kind: input, shape index: {}]
  %s2 = inlined_call_operand.vmem [shape: f32[8,1], index: 2, kind: input, shape index: {}]
  %s3 = inlined_call_operand.vmem [shape: f32[8,1], index: 3, kind: input, shape index: {}]
  %s4 = inlined_call_operand.vmem [shape: f32[2,2], index: 4, kind: input, shape index: {}]
  %s5 = inlined_call_operand.vmem [shape: f32[8,2], index: 5, kind: output, shape index: {}]
  %s6 = sld [smem:[#allocation0]]
  $region30: #{multicubenet_forward.29} parent=0
    _
  %s8 = ssub.s32 1, %s6
  %s9 = scalar_select 0, %s8, %s6
  // Predicated region
  $region2: #{multicubenet_forward.29} parent=0 // pred_check
    _
  $region3: #{multicubenet_forward.29} parent=0 // pred_check_branch
    %11 = sbr.rel (0) target = $region5
  $region4: #{multicubenet_forward.29} parent=0 // pred_region
    _
  $region5: #{multicubenet_forward.29} parent=0 // pred_fallthru
    _
  // Predicated region
  $region6: #{multicubenet_forward.29} parent=0 // pred_check
    _
  $region7: #{multicubenet_forward.29} parent=0 // pred_check_branch
    %13 = sbr.rel (0) target = $region9
  $region8: #{multicubenet_forward.29} parent=0 // pred_region
    _
  $region9: #{multicubenet_forward.29} parent=0 // pred_fallthru
    _
  // Predicated region
  $region10: #{multicubenet_forward.29} parent=0 // pred_check
    _
  $region11: #{multicubenet_forward.29} parent=0 // pred_check_branch
    %15 = sbr.rel (0) target = $region13
  $region12: #{multicubenet_forward.29} parent=0 // pred_region
    _
  $region13: #{multicubenet_forward.29} parent=0 // pred_fallthru
    _
  // Predicated region
  $region14: #{multicubenet_forward.29} parent=0 // pred_check
    _
  $region15: #{multicubenet_forward.29} parent=0 // pred_check_branch
    %17 = sbr.rel (0) target = $region17
  $region16: #{multicubenet_forward.29} parent=0 // pred_region
    _
  $region17: #{multicubenet_forward.29} parent=0 // pred_fallthru
    _
  // Predicated region
  $region18: #{multicubenet_forward.29} parent=0 // pred_check
    _
  $region19: #{multicubenet_forward.29} parent=0 // pred_check_branch
    %19 = sbr.rel (0) target = $region21
  $region20: #{multicubenet_forward.29} parent=0 // pred_region
    _
  $region21: #{multicubenet_forward.29} parent=0 // pred_fallthru
    _
  %v21 = vld [vmem:[%s1] sm:$0xff]
  %v22 = vld [vmem:[%s1 + $0x8] sm:$0xf]
  %v23 = vld [vmem:[%s0] sm:$0xf]
  %v24 = vld [vmem:[%s0 + $0x4] sm:$0xf]
  %v25 = vld [vmem:[%s0 + $0x8] sm:$0xf]
  %v26 = vld [vmem:[%s0 + $0xc] sm:$0xf]
  %v27 = vld [vmem:[%s0 + $0x10] sm:$0xf]
  %v28 = vld [vmem:[%s0 + $0x14] sm:$0xf]
  %v29 = vld [vmem:[%s0 + $0x18] sm:$0xf]
  %v30 = vld [vmem:[%s0 + $0x1c] sm:$0xf]
  %v31 = vld [vmem:[%s0 + $0x20] sm:$0xf]
  %v32 = vld [vmem:[%s0 + $0x24] sm:$0xf]
  %v33 = vld [vmem:[%s0 + $0x28] sm:$0xf]
  %v34 = vld [vmem:[%s0 + $0x2c] sm:$0xf]
  %v35 = vld [vmem:[%s0 + $0x30] sm:$0xf]
  %v36 = vld [vmem:[%s0 + $0x34] sm:$0xf]
  %v37 = vld [vmem:[%s0 + $0x38] sm:$0xf]
  %v38 = vld [vmem:[%s0 + $0x3c] sm:$0xf]
  %v39 = vld [vmem:[%s0 + $0x40] sm:$0xf]
  %v40 = vld [vmem:[%s0 + $0x44] sm:$0xf]
  %v41 = vld [vmem:[%s0 + $0x48] sm:$0xf]
  %v42 = vld [vmem:[%s0 + $0x4c] sm:$0xf]
  %v43 = vld [vmem:[%s0 + $0x50] sm:$0xf]
  %v44 = vld [vmem:[%s0 + $0x54] sm:$0xf]
  %v45 = vld [vmem:[%s0 + $0x58] sm:$0xf]
  %v46 = vld [vmem:[%s0 + $0x5c] sm:$0xf]
  %v47 = vld [vmem:[%s0 + $0x60] sm:$0xf]
  %v48 = vld [vmem:[%s0 + $0x64] sm:$0xf]
  %v49 = vld [vmem:[%s0 + $0x68] sm:$0xf]
  %v50 = vld [vmem:[%s0 + $0x6c] sm:$0xf]
  %v51 = vld [vmem:[%s0 + $0x70] sm:$0xf]
  %v52 = vld [vmem:[%s0 + $0x74] sm:$0xf]
  %v53 = vld [vmem:[%s0 + $0x78] sm:$0xf]
  %v54 = vld [vmem:[%s0 + $0x7c] sm:$0xf]
  %v55 = vld [vmem:[%s0 + $0x80] sm:$0xf]
  %v56 = vld [vmem:[%s0 + $0x84] sm:$0xf]
  %v57 = vld [vmem:[%s0 + $0x88] sm:$0xf]
  %v58 = vld [vmem:[%s0 + $0x8c] sm:$0xf]
  %v59 = vld [vmem:[%s0 + $0x90] sm:$0xf]
  %v60 = vld [vmem:[%s0 + $0x94] sm:$0x1]
  %v63 = vunpack.c.l.b16 %v21
  %v64 = vunpack.c.h.b16 %v21
  %v65 = vunpack.c.l.b16 %v22
  %v66 = vpack.c.b16 %v63, %v63
  %v67 = vpack.c.b16 %v64, %v64
  %v68 = vpack.c.b16 %v65, %v65
  %v109 = vunpack.c.l.b16 %v23
  %v110 = vunpack.c.l.b16 %v24
  %v111 = vunpack.c.l.b16 %v25
  %v112 = vunpack.c.l.b16 %v26
  %v113 = vunpack.c.l.b16 %v27
  %v114 = vunpack.c.l.b16 %v28
  %v115 = vunpack.c.l.b16 %v29
  %v116 = vunpack.c.l.b16 %v30
  %v117 = vunpack.c.l.b16 %v31
  %v118 = vunpack.c.l.b16 %v32
  %v119 = vunpack.c.l.b16 %v33
  %v120 = vunpack.c.l.b16 %v34
  %v121 = vunpack.c.l.b16 %v35
  %v122 = vunpack.c.l.b16 %v36
  %v123 = vunpack.c.l.b16 %v37
  %v124 = vunpack.c.l.b16 %v38
  %v125 = vunpack.c.l.b16 %v39
  %v126 = vunpack.c.l.b16 %v40
  %v127 = vunpack.c.l.b16 %v41
  %v128 = vunpack.c.l.b16 %v42
  %v129 = vunpack.c.l.b16 %v43
  %v130 = vunpack.c.l.b16 %v44
  %v131 = vunpack.c.l.b16 %v45
  %v132 = vunpack.c.l.b16 %v46
  %v133 = vunpack.c.l.b16 %v47
  %v134 = vunpack.c.l.b16 %v48
  %v135 = vunpack.c.l.b16 %v49
  %v136 = vunpack.c.l.b16 %v50
  %v137 = vunpack.c.l.b16 %v51
  %v138 = vunpack.c.l.b16 %v52
  %v139 = vunpack.c.l.b16 %v53
  %v140 = vunpack.c.l.b16 %v54
  %v141 = vunpack.c.l.b16 %v55
  %v142 = vunpack.c.l.b16 %v56
  %v143 = vunpack.c.l.b16 %v57
  %v144 = vunpack.c.l.b16 %v58
  %v145 = vunpack.c.l.b16 %v59
  %v146 = vunpack.c.l.b16 %v60
  %v147 = vpack.c.b16 %v110, %v109
  %v148 = vpack.c.b16 %v112, %v111
  %v149 = vpack.c.b16 %v114, %v113
  %v150 = vpack.c.b16 %v116, %v115
  %v151 = vpack.c.b16 %v118, %v117
  %v152 = vpack.c.b16 %v120, %v119
  %v153 = vpack.c.b16 %v122, %v121
  %v154 = vpack.c.b16 %v124, %v123
  %v155 = vpack.c.b16 %v126, %v125
  %v156 = vpack.c.b16 %v128, %v127
  %v157 = vpack.c.b16 %v130, %v129
  %v158 = vpack.c.b16 %v132, %v131
  %v159 = vpack.c.b16 %v134, %v133
  %v160 = vpack.c.b16 %v136, %v135
  %v161 = vpack.c.b16 %v138, %v137
  %v162 = vpack.c.b16 %v140, %v139
  %v163 = vpack.c.b16 %v142, %v141
  %v164 = vpack.c.b16 %v144, %v143
  %v165 = vpack.c.b16 %v146, %v145
  %vm184 = vcmask 334848
  %v186 = vsel %vm184, %v68, 0
  %vm188 = vcmask 1043456
  %vm189 = vcmask 1044480
  %v190 = vsel %vm188, 4294967295, 65535
  %v191 = vsel %vm189, %v190, 0
  %v193 = vand.u32 %v165, %v191
  %195 = vmatprep.subr.bf16.mxu0 0
  %196 = vmatpush1.bf16.msra.mxu0 %v147
  %197 = vmatprep.subr.bf16.mxu0 0
  %198 = vmatpush1.bf16.msra.mxu0 %v148
  %199 = vmatprep.subr.bf16.mxu0 0
  %200 = vmatpush1.bf16.msra.mxu0 %v149
  %201 = vmatprep.subr.bf16.mxu0 0
  %202 = vmatpush1.bf16.msra.mxu0 %v150
  %203 = vmatprep.subr.bf16.mxu0 0
  %204 = vmatpush1.bf16.msra.mxu0 %v151
  %205 = vmatprep.subr.bf16.mxu0 0
  %206 = vmatpush1.bf16.msra.mxu0 %v152
  %207 = vmatprep.subr.bf16.mxu0 0
  %208 = vmatpush1.bf16.msra.mxu0 %v153
  %209 = vmatprep.subr.bf16.mxu0 0
  %210 = vmatpush1.bf16.msra.mxu0 %v154
  %211 = vmatprep.subr.bf16.mxu0 0
  %212 = vmatpush1.bf16.msra.mxu0 %v155
  %213 = vmatprep.subr.bf16.mxu0 0
  %214 = vmatpush1.bf16.msra.mxu0 %v156
  %215 = vmatprep.subr.bf16.mxu0 0
  %216 = vmatpush1.bf16.msra.mxu0 %v157
  %217 = vmatprep.subr.bf16.mxu0 0
  %218 = vmatpush1.bf16.msra.mxu0 %v158
  %219 = vmatprep.subr.bf16.mxu0 0
  %220 = vmatpush1.bf16.msra.mxu0 %v159
  %221 = vmatprep.subr.bf16.mxu0 0
  %222 = vmatpush1.bf16.msra.mxu0 %v160
  %223 = vmatprep.subr.bf16.mxu0 0
  %224 = vmatpush1.bf16.msra.mxu0 %v161
  %225 = vmatprep.subr.bf16.mxu0 0
  %226 = vmatpush1.bf16.msra.mxu0 %v162
  %227 = vmatprep.mubr.bf16.mxu0 %v67
  %228 = vmatmul.mubr.bf16.gmra.mrb[0].mxu0 %v66
  %v229 = vpop.f32.mrb[0].mxu0
  %v230 = vadd.f32 0.0, %v229
  %v231 = vpop.f32.mrb[0].mxu0
  %v232 = vpop.f32.mrb[0].mxu0
  %v233 = vpop.f32.mrb[0].mxu0
  %234 = vdwg.mxu0
  %235 = vmatprep.subr.bf16.mxu0 0
  %236 = vmatpush1.bf16.msra.mxu0 %v163
  %237 = vmatprep.subr.bf16.mxu0 0
  %238 = vmatpush1.bf16.msra.mxu0 %v164
  %239 = vmatprep.subr.bf16.mxu0 0
  %240 = vmatpush1.bf16.msra.mxu0 %v193
  %241 = vmatprep.subr.bf16.mxu0 0
  %242 = vmatpush1.bf16.msra.mxu0 0
  %243 = vmatprep.subr.bf16.mxu0 0
  %244 = vmatpush1.bf16.msra.mxu0 0
  %245 = vmatprep.subr.bf16.mxu0 0
  %246 = vmatpush1.bf16.msra.mxu0 0
  %247 = vmatprep.subr.bf16.mxu0 0
  %248 = vmatpush1.bf16.msra.mxu0 0
  %249 = vmatprep.subr.bf16.mxu0 0
  %250 = vmatpush1.bf16.msra.mxu0 0
  %251 = vmatprep.subr.bf16.mxu0 0
  %252 = vmatpush1.bf16.msra.mxu0 0
  %253 = vmatprep.subr.bf16.mxu0 0
  %254 = vmatpush1.bf16.msra.mxu0 0
  %255 = vmatprep.subr.bf16.mxu0 0
  %256 = vmatpush1.bf16.msra.mxu0 0
  %257 = vmatprep.subr.bf16.mxu0 0
  %258 = vmatpush1.bf16.msra.mxu0 0
  %259 = vmatprep.subr.bf16.mxu0 0
  %260 = vmatpush1.bf16.msra.mxu0 0
  %261 = vmatprep.subr.bf16.mxu0 0
  %262 = vmatpush1.bf16.msra.mxu0 0
  %263 = vmatprep.subr.bf16.mxu0 0
  %264 = vmatpush1.bf16.msra.mxu0 0
  %265 = vmatprep.subr.bf16.mxu0 0
  %266 = vmatpush1.bf16.msra.mxu0 0
  %267 = vmatprep.mubr.bf16.mxu0 0
  %268 = vmatmul.mubr.bf16.gmra.mrb[0].mxu0 %v186
  %v269 = vpop.f32.mrb[0].mxu0
  %v270 = vadd.f32 %v230, %v269
  %v271 = vpop.f32.mrb[0].mxu0
  %v272 = vpop.f32.mrb[0].mxu0
  %v273 = vpop.f32.mrb[0].mxu0
  %274 = vdwg.mxu0
  %vm275 = vcmask 15360
  %v276 = vsel %vm275, %v270, 0.0
  %277 = vadd.xlane.f32.xlu0 %v276
  %v278 = vpop.xlane.xlu0 %277
  %v279 = vrcp.pop 2.0
  %v280 = vmul.f32 %v278, %v279
  %v281 = vsub.f32 %v270, %v280
  %v282 = vmul.f32 %v281, %v281
  %v283 = vsel %vm275, %v282, 0.0
  %284 = vadd.xlane.f32.xlu0 %v283
  %v285 = vpop.xlane.xlu0 %284
  %v286 = vmul.f32 %v285, %v279
  %v287 = vadd.f32 %v286, 1e-05
  %v288 = vrsqrt.pop %v287
  %v289 = vld [vmem:[%s2] sm:$0xff]
  %v290 = vmul.f32 %v288, %v289
  %292 = vset.pattern.permute.xlu0 0
  %293 = vperm.xlu0 %292, %v290
  %v294 = vpop.permute.xlu0 %293
  %v296 = vmul.f32 %v281, %v294
  %v297 = vld [vmem:[%s3] sm:$0xff]
  %299 = vset.pattern.permute.xlu0 0
  %300 = vperm.xlu0 %299, %v297
  %v301 = vpop.permute.xlu0 %300
  %v303 = vadd.f32 %v296, %v301
  %v304 = vmax.f32 %v303, 0.0
  %v305 = vld [vmem:[%s4] sm:$0x3]
  %v307 = vsel %vm275, %v304, 0
  %vm309 = vcmask 1041408
  %v311 = vsel %vm309, %v305, 0
  %313 = vmatprep.subr.mxu0 0.0
  %314 = vmatpush1.msra.mxu0 %v311
  %315 = vmatprep.subr.mxu0 0.0
  %316 = vmatpush1.msra.mxu0 0.0
  %317 = vmatprep.subr.mxu0 0.0
  %318 = vmatpush1.msra.mxu0 0.0
  %319 = vmatprep.subr.mxu0 0.0
  %320 = vmatpush1.msra.mxu0 0.0
  %321 = vmatprep.subr.mxu0 0.0
  %322 = vmatpush1.msra.mxu0 0.0
  %323 = vmatprep.subr.mxu0 0.0
  %324 = vmatpush1.msra.mxu0 0.0
  %325 = vmatprep.subr.mxu0 0.0
  %326 = vmatpush1.msra.mxu0 0.0
  %327 = vmatprep.subr.mxu0 0.0
  %328 = vmatpush1.msra.mxu0 0.0
  %329 = vmatprep.subr.mxu0 0.0
  %330 = vmatpush1.msra.mxu0 0.0
  %331 = vmatprep.subr.mxu0 0.0
  %332 = vmatpush1.msra.mxu0 0.0
  %333 = vmatprep.subr.mxu0 0.0
  %334 = vmatpush1.msra.mxu0 0.0
  %335 = vmatprep.subr.mxu0 0.0
  %336 = vmatpush1.msra.mxu0 0.0
  %337 = vmatprep.subr.mxu0 0.0
  %338 = vmatpush1.msra.mxu0 0.0
  %339 = vmatprep.subr.mxu0 0.0
  %340 = vmatpush1.msra.mxu0 0.0
  %341 = vmatprep.subr.mxu0 0.0
  %342 = vmatpush1.msra.mxu0 0.0
  %343 = vmatprep.subr.mxu0 0.0
  %344 = vmatpush1.msra.mxu0 0.0
  %345 = vmatprep.subr.mxu0 0.0
  %346 = vmatpush1.msra.mxu0 0.0
  %347 = vmatprep.subr.mxu0 0.0
  %348 = vmatpush1.msra.mxu0 0.0
  %349 = vmatprep.subr.mxu0 0.0
  %350 = vmatpush1.msra.mxu0 0.0
  %351 = vmatprep.subr.mxu0 0.0
  %352 = vmatpush1.msra.mxu0 0.0
  %353 = vmatprep.subr.mxu0 0.0
  %354 = vmatpush1.msra.mxu0 0.0
  %355 = vmatprep.subr.mxu0 0.0
  %356 = vmatpush1.msra.mxu0 0.0
  %357 = vmatprep.subr.mxu0 0.0
  %358 = vmatpush1.msra.mxu0 0.0
  %359 = vmatprep.subr.mxu0 0.0
  %360 = vmatpush1.msra.mxu0 0.0
  %361 = vmatprep.subr.mxu0 0.0
  %362 = vmatpush1.msra.mxu0 0.0
  %363 = vmatprep.subr.mxu0 0.0
  %364 = vmatpush1.msra.mxu0 0.0
  %365 = vmatprep.subr.mxu0 0.0
  %366 = vmatpush1.msra.mxu0 0.0
  %367 = vmatprep.subr.mxu0 0.0
  %368 = vmatpush1.msra.mxu0 0.0
  %369 = vmatprep.subr.mxu0 0.0
  %370 = vmatpush1.msra.mxu0 0.0
  %371 = vmatprep.subr.mxu0 0.0
  %372 = vmatpush1.msra.mxu0 0.0
  %373 = vmatprep.subr.mxu0 0.0
  %374 = vmatpush1.msra.mxu0 0.0
  %375 = vmatprep.subr.mxu0 0.0
  %376 = vmatpush1.msra.mxu0 0.0
  %377 = vmatprep.mubr.f32.mxu0 0.0
  %378 = vmatmul.mubr.f32.gmra.mrb[0].mxu0 %v307
  %v379 = vpop.f32.mrb[0].mxu0
  %v380 = vadd.f32 0.0, %v379
  %v381 = vpop.f32.mrb[0].mxu0
  %382 = vdwg.mxu0
  %383 = vst.msk [vmem:[%s5] sm:$0xff] %vm275, %v380
  // Predicated region
  $region22: #{multicubenet_forward.29} parent=0 // pred_check
    _
  $region23: #{multicubenet_forward.29} parent=0 // pred_check_branch
    %385 = sbr.rel (0) target = $region25
  $region24: #{multicubenet_forward.29} parent=0 // pred_region
    _
  $region25: #{multicubenet_forward.29} parent=0 // pred_fallthru
    _
  // Predicated region
  $region26: #{multicubenet_forward.29} parent=0 // pred_check
    _
  $region27: #{multicubenet_forward.29} parent=0 // pred_check_branch
    %387 = sbr.rel (0) target = $region29
  $region28: #{multicubenet_forward.29} parent=0 // pred_region
    _
  $region29: #{multicubenet_forward.29} parent=0 // pred_fallthru
    _

// kernel: multicubenet_forward.28
$region0: #{multicubenet_forward.28}
  #allocation0 [shape = 'u32[]', space=smem, size = 0x4, offset = 0x4, fixed_abs, tag = 'smem constant byte address 0x4 - core index']
  #allocation1 [shape = 'u32[144,128]{1,0:T(1,128)}', space=vmem, size = 0x12000, scoped, tag = 'internal scratch']
  %s0 = inlined_call_operand.vmem [shape: bf16[216,2], index: 0, kind: input, shape index: {}]
  %s1 = inlined_call_operand.vmem [shape: bf16[8,216], index: 1, kind: input, shape index: {}]
  %s2 = inlined_call_operand.vmem [shape: f32[8,1], index: 2, kind: input, shape index: {}]
  %s3 = inlined_call_operand.vmem [shape: f32[8,1], index: 3, kind: input, shape index: {}]
  %s4 = inlined_call_operand.vmem [shape: f32[2,2], index: 4, kind: input, shape index: {}]
  %s5 = inlined_call_operand.vmem [shape: f32[8,2], index: 5, kind: output, shape index: {}]
  %s6 = sld [smem:[#allocation0]]
  $region30: #{multicubenet_forward.28} parent=0
    _
  %s8 = ssub.s32 1, %s6
  %s9 = scalar_select 0, %s8, %s6
  // Predicated region
  $region2: #{multicubenet_forward.28} parent=0 // pred_check
    _
  $region3: #{multicubenet_forward.28} parent=0 // pred_check_branch
    %11 = sbr.rel (0) target = $region5
  $region4: #{multicubenet_forward.28} parent=0 // pred_region
    _
  $region5: #{multicubenet_forward.28} parent=0 // pred_fallthru
    _
  // Predicated region
  $region6: #{multicubenet_forward.28} parent=0 // pred_check
    _
  $region7: #{multicubenet_forward.28} parent=0 // pred_check_branch
    %13 = sbr.rel (0) target = $region9
  $region8: #{multicubenet_forward.28} parent=0 // pred_region
    _
  $region9: #{multicubenet_forward.28} parent=0 // pred_fallthru
    _
  // Predicated region
  $region10: #{multicubenet_forward.28} parent=0 // pred_check
    _
  $region11: #{multicubenet_forward.28} parent=0 // pred_check_branch
    %15 = sbr.rel (0) target = $region13
  $region12: #{multicubenet_forward.28} parent=0 // pred_region
    _
  $region13: #{multicubenet_forward.28} parent=0 // pred_fallthru
    _
  // Predicated region
  $region14: #{multicubenet_forward.28} parent=0 // pred_check
    _
  $region15: #{multicubenet_forward.28} parent=0 // pred_check_branch
    %17 = sbr.rel (0) target = $region17
  $region16: #{multicubenet_forward.28} parent=0 // pred_region
    _
  $region17: #{multicubenet_forward.28} parent=0 // pred_fallthru
    _
  // Predicated region
  $region18: #{multicubenet_forward.28} parent=0 // pred_check
    _
  $region19: #{multicubenet_forward.28} parent=0 // pred_check_branch
    %19 = sbr.rel (0) target = $region21
  $region20: #{multicubenet_forward.28} parent=0 // pred_region
    _
  $region21: #{multicubenet_forward.28} parent=0 // pred_fallthru
    _
  %v21 = vld [vmem:[%s1] sm:$0xff]
  %v22 = vld [vmem:[%s0] sm:$0xf]
  %v23 = vld [vmem:[%s0 + $0x4] sm:$0xf]
  %v24 = vld [vmem:[%s0 + $0x8] sm:$0xf]
  %v25 = vld [vmem:[%s0 + $0xc] sm:$0xf]
  %v26 = vld [vmem:[%s0 + $0x10] sm:$0xf]
  %v27 = vld [vmem:[%s0 + $0x14] sm:$0xf]
  %v28 = vld [vmem:[%s0 + $0x18] sm:$0xf]
  %v29 = vld [vmem:[%s0 + $0x1c] sm:$0xf]
  %v30 = vld [vmem:[%s0 + $0x20] sm:$0xf]
  %v31 = vld [vmem:[%s0 + $0x24] sm:$0xf]
  %v32 = vld [vmem:[%s0 + $0x28] sm:$0xf]
  %v33 = vld [vmem:[%s0 + $0x2c] sm:$0xf]
  %v34 = vld [vmem:[%s0 + $0x30] sm:$0xf]
  %v35 = vld [vmem:[%s0 + $0x34] sm:$0xf]
  %v36 = vld [vmem:[%s0 + $0x38] sm:$0xf]
  %v37 = vld [vmem:[%s0 + $0x3c] sm:$0xf]
  %v38 = vld [vmem:[%s0 + $0x40] sm:$0xf]
  %v39 = vld [vmem:[%s0 + $0x44] sm:$0xf]
  %v40 = vld [vmem:[%s0 + $0x48] sm:$0xf]
  %v41 = vld [vmem:[%s0 + $0x4c] sm:$0xf]
  %v42 = vld [vmem:[%s0 + $0x50] sm:$0xf]
  %v43 = vld [vmem:[%s0 + $0x54] sm:$0xf]
  %v44 = vld [vmem:[%s0 + $0x58] sm:$0xf]
  %v45 = vld [vmem:[%s0 + $0x5c] sm:$0xf]
  %v46 = vld [vmem:[%s0 + $0x60] sm:$0xf]
  %v47 = vld [vmem:[%s0 + $0x64] sm:$0xf]
  %v48 = vld [vmem:[%s0 + $0x68] sm:$0xf]
  %v50 = vunpack.c.l.b16 %v21
  %v51 = vunpack.c.h.b16 %v21
  %v52 = vpack.c.b16 %v50, %v50
  %v53 = vpack.c.b16 %v51, %v51
  %v82 = vunpack.c.l.b16 %v22
  %v83 = vunpack.c.l.b16 %v23
  %v84 = vunpack.c.l.b16 %v24
  %v85 = vunpack.c.l.b16 %v25
  %v86 = vunpack.c.l.b16 %v26
  %v87 = vunpack.c.l.b16 %v27
  %v88 = vunpack.c.l.b16 %v28
  %v89 = vunpack.c.l.b16 %v29
  %v90 = vunpack.c.l.b16 %v30
  %v91 = vunpack.c.l.b16 %v31
  %v92 = vunpack.c.l.b16 %v32
  %v93 = vunpack.c.l.b16 %v33
  %v94 = vunpack.c.l.b16 %v34
  %v95 = vunpack.c.l.b16 %v35
  %v96 = vunpack.c.l.b16 %v36
  %v97 = vunpack.c.l.b16 %v37
  %v98 = vunpack.c.l.b16 %v38
  %v99 = vunpack.c.l.b16 %v39
  %v100 = vunpack.c.l.b16 %v40
  %v101 = vunpack.c.l.b16 %v41
  %v102 = vunpack.c.l.b16 %v42
  %v103 = vunpack.c.l.b16 %v43
  %v104 = vunpack.c.l.b16 %v44
  %v105 = vunpack.c.l.b16 %v45
  %v106 = vunpack.c.l.b16 %v46
  %v107 = vunpack.c.l.b16 %v47
  %v108 = vunpack.c.l.b16 %v48
  %v109 = vpack.c.b16 %v83, %v82
  %v110 = vpack.c.b16 %v85, %v84
  %v111 = vpack.c.b16 %v87, %v86
  %v112 = vpack.c.b16 %v89, %v88
  %v113 = vpack.c.b16 %v91, %v90
  %v114 = vpack.c.b16 %v93, %v92
  %v115 = vpack.c.b16 %v95, %v94
  %v116 = vpack.c.b16 %v97, %v96
  %v117 = vpack.c.b16 %v99, %v98
  %v118 = vpack.c.b16 %v101, %v100
  %v119 = vpack.c.b16 %v103, %v102
  %v120 = vpack.c.b16 %v105, %v104
  %v121 = vpack.c.b16 %v107, %v106
  %v122 = vpack.c.b16 %v108, %v108
  %vm136 = vcmask 719872
  %v138 = vsel %vm136, %v53, 0
  %vm140 = vcmask 1043456
  %v142 = vsel %vm140, %v122, 0
  %144 = vmatprep.subr.bf16.mxu0 0
  %145 = vmatpush1.bf16.msra.mxu0 %v109
  %146 = vmatprep.subr.bf16.mxu0 0
  %147 = vmatpush1.bf16.msra.mxu0 %v110
  %148 = vmatprep.subr.bf16.mxu0 0
  %149 = vmatpush1.bf16.msra.mxu0 %v111
  %150 = vmatprep.subr.bf16.mxu0 0
  %151 = vmatpush1.bf16.msra.mxu0 %v112
  %152 = vmatprep.subr.bf16.mxu0 0
  %153 = vmatpush1.bf16.msra.mxu0 %v113
  %154 = vmatprep.subr.bf16.mxu0 0
  %155 = vmatpush1.bf16.msra.mxu0 %v114
  %156 = vmatprep.subr.bf16.mxu0 0
  %157 = vmatpush1.bf16.msra.mxu0 %v115
  %158 = vmatprep.subr.bf16.mxu0 0
  %159 = vmatpush1.bf16.msra.mxu0 %v116
  %160 = vmatprep.subr.bf16.mxu0 0
  %161 = vmatpush1.bf16.msra.mxu0 %v117
  %162 = vmatprep.subr.bf16.mxu0 0
  %163 = vmatpush1.bf16.msra.mxu0 %v118
  %164 = vmatprep.subr.bf16.mxu0 0
  %165 = vmatpush1.bf16.msra.mxu0 %v119
  %166 = vmatprep.subr.bf16.mxu0 0
  %167 = vmatpush1.bf16.msra.mxu0 %v120
  %168 = vmatprep.subr.bf16.mxu0 0
  %169 = vmatpush1.bf16.msra.mxu0 %v121
  %170 = vmatprep.subr.bf16.mxu0 0
  %171 = vmatpush1.bf16.msra.mxu0 %v142
  %172 = vmatprep.subr.bf16.mxu0 0
  %173 = vmatpush1.bf16.msra.mxu0 0
  %174 = vmatprep.subr.bf16.mxu0 0
  %175 = vmatpush1.bf16.msra.mxu0 0
  %176 = vmatprep.mubr.bf16.mxu0 %v138
  %177 = vmatmul.mubr.bf16.gmra.mrb[0].mxu0 %v52
  %v178 = vpop.f32.mrb[0].mxu0
  %v179 = vadd.f32 0.0, %v178
  %v180 = vpop.f32.mrb[0].mxu0
  %v181 = vpop.f32.mrb[0].mxu0
  %v182 = vpop.f32.mrb[0].mxu0
  %183 = vdwg.mxu0
  %vm184 = vcmask 15360
  %v185 = vsel %vm184, %v179, 0.0
  %186 = vadd.xlane.f32.xlu0 %v185
  %v187 = vpop.xlane.xlu0 %186
  %v188 = vrcp.pop 2.0
  %v189 = vmul.f32 %v187, %v188
  %v190 = vsub.f32 %v179, %v189
  %v191 = vmul.f32 %v190, %v190
  %v192 = vsel %vm184, %v191, 0.0
  %193 = vadd.xlane.f32.xlu0 %v192
  %v194 = vpop.xlane.xlu0 %193
  %v195 = vmul.f32 %v194, %v188
  %v196 = vadd.f32 %v195, 1e-05
  %v197 = vrsqrt.pop %v196
  %v198 = vld [vmem:[%s2] sm:$0xff]
  %v199 = vmul.f32 %v197, %v198
  %201 = vset.pattern.permute.xlu0 0
  %202 = vperm.xlu0 %201, %v199
  %v203 = vpop.permute.xlu0 %202
  %v205 = vmul.f32 %v190, %v203
  %v206 = vld [vmem:[%s3] sm:$0xff]
  %208 = vset.pattern.permute.xlu0 0
  %209 = vperm.xlu0 %208, %v206
  %v210 = vpop.permute.xlu0 %209
  %v212 = vadd.f32 %v205, %v210
  %v213 = vmax.f32 %v212, 0.0
  %v214 = vld [vmem:[%s4] sm:$0x3]
  %v216 = vsel %vm184, %v213, 0
  %vm218 = vcmask 1041408
  %v220 = vsel %vm218, %v214, 0
  %222 = vmatprep.subr.mxu0 0.0
  %223 = vmatpush1.msra.mxu0 %v220
  %224 = vmatprep.subr.mxu0 0.0
  %225 = vmatpush1.msra.mxu0 0.0
  %226 = vmatprep.subr.mxu0 0.0
  %227 = vmatpush1.msra.mxu0 0.0
  %228 = vmatprep.subr.mxu0 0.0
  %229 = vmatpush1.msra.mxu0 0.0
  %230 = vmatprep.subr.mxu0 0.0
  %231 = vmatpush1.msra.mxu0 0.0
  %232 = vmatprep.subr.mxu0 0.0
  %233 = vmatpush1.msra.mxu0 0.0
  %234 = vmatprep.subr.mxu0 0.0
  %235 = vmatpush1.msra.mxu0 0.0
  %236 = vmatprep.subr.mxu0 0.0
  %237 = vmatpush1.msra.mxu0 0.0
  %238 = vmatprep.subr.mxu0 0.0
  %239 = vmatpush1.msra.mxu0 0.0
  %240 = vmatprep.subr.mxu0 0.0
  %241 = vmatpush1.msra.mxu0 0.0
  %242 = vmatprep.subr.mxu0 0.0
  %243 = vmatpush1.msra.mxu0 0.0
  %244 = vmatprep.subr.mxu0 0.0
  %245 = vmatpush1.msra.mxu0 0.0
  %246 = vmatprep.subr.mxu0 0.0
  %247 = vmatpush1.msra.mxu0 0.0
  %248 = vmatprep.subr.mxu0 0.0
  %249 = vmatpush1.msra.mxu0 0.0
  %250 = vmatprep.subr.mxu0 0.0
  %251 = vmatpush1.msra.mxu0 0.0
  %252 = vmatprep.subr.mxu0 0.0
  %253 = vmatpush1.msra.mxu0 0.0
  %254 = vmatprep.subr.mxu0 0.0
  %255 = vmatpush1.msra.mxu0 0.0
  %256 = vmatprep.subr.mxu0 0.0
  %257 = vmatpush1.msra.mxu0 0.0
  %258 = vmatprep.subr.mxu0 0.0
  %259 = vmatpush1.msra.mxu0 0.0
  %260 = vmatprep.subr.mxu0 0.0
  %261 = vmatpush1.msra.mxu0 0.0
  %262 = vmatprep.subr.mxu0 0.0
  %263 = vmatpush1.msra.mxu0 0.0
  %264 = vmatprep.subr.mxu0 0.0
  %265 = vmatpush1.msra.mxu0 0.0
  %266 = vmatprep.subr.mxu0 0.0
  %267 = vmatpush1.msra.mxu0 0.0
  %268 = vmatprep.subr.mxu0 0.0
  %269 = vmatpush1.msra.mxu0 0.0
  %270 = vmatprep.subr.mxu0 0.0
  %271 = vmatpush1.msra.mxu0 0.0
  %272 = vmatprep.subr.mxu0 0.0
  %273 = vmatpush1.msra.mxu0 0.0
  %274 = vmatprep.subr.mxu0 0.0
  %275 = vmatpush1.msra.mxu0 0.0
  %276 = vmatprep.subr.mxu0 0.0
  %277 = vmatpush1.msra.mxu0 0.0
  %278 = vmatprep.subr.mxu0 0.0
  %279 = vmatpush1.msra.mxu0 0.0
  %280 = vmatprep.subr.mxu0 0.0
  %281 = vmatpush1.msra.mxu0 0.0
  %282 = vmatprep.subr.mxu0 0.0
  %283 = vmatpush1.msra.mxu0 0.0
  %284 = vmatprep.subr.mxu0 0.0
  %285 = vmatpush1.msra.mxu0 0.0
  %286 = vmatprep.mubr.f32.mxu0 0.0
  %287 = vmatmul.mubr.f32.gmra.mrb[0].mxu0 %v216
  %v288 = vpop.f32.mrb[0].mxu0
  %v289 = vadd.f32 0.0, %v288
  %v290 = vpop.f32.mrb[0].mxu0
  %291 = vdwg.mxu0
  %292 = vst.msk [vmem:[%s5] sm:$0xff] %vm184, %v289
  // Predicated region
  $region22: #{multicubenet_forward.28} parent=0 // pred_check
    _
  $region23: #{multicubenet_forward.28} parent=0 // pred_check_branch
    %294 = sbr.rel (0) target = $region25
  $region24: #{multicubenet_forward.28} parent=0 // pred_region
    _
  $region25: #{multicubenet_forward.28} parent=0 // pred_fallthru
    _
  // Predicated region
  $region26: #{multicubenet_forward.28} parent=0 // pred_check
    _
  $region27: #{multicubenet_forward.28} parent=0 // pred_check_branch
    %296 = sbr.rel (0) target = $region29
  $region28: #{multicubenet_forward.28} parent=0 // pred_region
    _
  $region29: #{multicubenet_forward.28} parent=0 // pred_fallthru
    _

// kernel: multicubenet_forward.25
$region0: #{multicubenet_forward.25}
  #allocation0 [shape = 'u32[]', space=smem, size = 0x4, offset = 0x4, fixed_abs, tag = 'smem constant byte address 0x4 - core index']
  #allocation1 [shape = 'u32[144,128]{1,0:T(1,128)}', space=vmem, size = 0x12000, scoped, tag = 'internal scratch']
  %s0 = inlined_call_operand.vmem [shape: bf16[216,2], index: 0, kind: input, shape index: {}]
  %s1 = inlined_call_operand.vmem [shape: bf16[8,216], index: 1, kind: input, shape index: {}]
  %s2 = inlined_call_operand.vmem [shape: f32[8,1], index: 2, kind: input, shape index: {}]
  %s3 = inlined_call_operand.vmem [shape: f32[8,1], index: 3, kind: input, shape index: {}]
  %s4 = inlined_call_operand.vmem [shape: f32[8,2], index: 4, kind: output, shape index: {}]
  %s5 = sld [smem:[#allocation0]]
  $region26: #{multicubenet_forward.25} parent=0
    _
  %s7 = ssub.s32 1, %s5
  %s8 = scalar_select 0, %s7, %s5
  // Predicated region
  $region2: #{multicubenet_forward.25} parent=0 // pred_check
    _
  $region3: #{multicubenet_forward.25} parent=0 // pred_check_branch
    %10 = sbr.rel (0) target = $region5
  $region4: #{multicubenet_forward.25} parent=0 // pred_region
    _
  $region5: #{multicubenet_forward.25} parent=0 // pred_fallthru
    _
  // Predicated region
  $region6: #{multicubenet_forward.25} parent=0 // pred_check
    _
  $region7: #{multicubenet_forward.25} parent=0 // pred_check_branch
    %12 = sbr.rel (0) target = $region9
  $region8: #{multicubenet_forward.25} parent=0 // pred_region
    _
  $region9: #{multicubenet_forward.25} parent=0 // pred_fallthru
    _
  // Predicated region
  $region10: #{multicubenet_forward.25} parent=0 // pred_check
    _
  $region11: #{multicubenet_forward.25} parent=0 // pred_check_branch
    %14 = sbr.rel (0) target = $region13
  $region12: #{multicubenet_forward.25} parent=0 // pred_region
    _
  $region13: #{multicubenet_forward.25} parent=0 // pred_fallthru
    _
  // Predicated region
  $region14: #{multicubenet_forward.25} parent=0 // pred_check
    _
  $region15: #{multicubenet_forward.25} parent=0 // pred_check_branch
    %16 = sbr.rel (0) target = $region17
  $region16: #{multicubenet_forward.25} parent=0 // pred_region
    _
  $region17: #{multicubenet_forward.25} parent=0 // pred_fallthru
    _
  %v18 = vld [vmem:[%s1] sm:$0xff]
  %v19 = vld [vmem:[%s0] sm:$0xf]
  %v20 = vld [vmem:[%s0 + $0x4] sm:$0xf]
  %v21 = vld [vmem:[%s0 + $0x8] sm:$0xf]
  %v22 = vld [vmem:[%s0 + $0xc] sm:$0xf]
  %v23 = vld [vmem:[%s0 + $0x10] sm:$0xf]
  %v24 = vld [vmem:[%s0 + $0x14] sm:$0xf]
  %v25 = vld [vmem:[%s0 + $0x18] sm:$0xf]
  %v26 = vld [vmem:[%s0 + $0x1c] sm:$0xf]
  %v27 = vld [vmem:[%s0 + $0x20] sm:$0xf]
  %v28 = vld [vmem:[%s0 + $0x24] sm:$0xf]
  %v29 = vld [vmem:[%s0 + $0x28] sm:$0xf]
  %v30 = vld [vmem:[%s0 + $0x2c] sm:$0xf]
  %v31 = vld [vmem:[%s0 + $0x30] sm:$0xf]
  %v32 = vld [vmem:[%s0 + $0x34] sm:$0xf]
  %v33 = vld [vmem:[%s0 + $0x38] sm:$0xf]
  %v34 = vld [vmem:[%s0 + $0x3c] sm:$0xf]
  %v35 = vld [vmem:[%s0 + $0x40] sm:$0xf]
  %v36 = vld [vmem:[%s0 + $0x44] sm:$0xf]
  %v37 = vld [vmem:[%s0 + $0x48] sm:$0xf]
  %v38 = vld [vmem:[%s0 + $0x4c] sm:$0xf]
  %v39 = vld [vmem:[%s0 + $0x50] sm:$0xf]
  %v40 = vld [vmem:[%s0 + $0x54] sm:$0xf]
  %v41 = vld [vmem:[%s0 + $0x58] sm:$0xf]
  %v42 = vld [vmem:[%s0 + $0x5c] sm:$0xf]
  %v43 = vld [vmem:[%s0 + $0x60] sm:$0xf]
  %v44 = vld [vmem:[%s0 + $0x64] sm:$0xf]
  %v45 = vld [vmem:[%s0 + $0x68] sm:$0xf]
  %v47 = vunpack.c.l.b16 %v18
  %v48 = vunpack.c.h.b16 %v18
  %v49 = vpack.c.b16 %v47, %v47
  %v50 = vpack.c.b16 %v48, %v48
  %v79 = vunpack.c.l.b16 %v19
  %v80 = vunpack.c.l.b16 %v20
  %v81 = vunpack.c.l.b16 %v21
  %v82 = vunpack.c.l.b16 %v22
  %v83 = vunpack.c.l.b16 %v23
  %v84 = vunpack.c.l.b16 %v24
  %v85 = vunpack.c.l.b16 %v25
  %v86 = vunpack.c.l.b16 %v26
  %v87 = vunpack.c.l.b16 %v27
  %v88 = vunpack.c.l.b16 %v28
  %v89 = vunpack.c.l.b16 %v29
  %v90 = vunpack.c.l.b16 %v30
  %v91 = vunpack.c.l.b16 %v31
  %v92 = vunpack.c.l.b16 %v32
  %v93 = vunpack.c.l.b16 %v33
  %v94 = vunpack.c.l.b16 %v34
  %v95 = vunpack.c.l.b16 %v35
  %v96 = vunpack.c.l.b16 %v36
  %v97 = vunpack.c.l.b16 %v37
  %v98 = vunpack.c.l.b16 %v38
  %v99 = vunpack.c.l.b16 %v39
  %v100 = vunpack.c.l.b16 %v40
  %v101 = vunpack.c.l.b16 %v41
  %v102 = vunpack.c.l.b16 %v42
  %v103 = vunpack.c.l.b16 %v43
  %v104 = vunpack.c.l.b16 %v44
  %v105 = vunpack.c.l.b16 %v45
  %v106 = vpack.c.b16 %v80, %v79
  %v107 = vpack.c.b16 %v82, %v81
  %v108 = vpack.c.b16 %v84, %v83
  %v109 = vpack.c.b16 %v86, %v85
  %v110 = vpack.c.b16 %v88, %v87
  %v111 = vpack.c.b16 %v90, %v89
  %v112 = vpack.c.b16 %v92, %v91
  %v113 = vpack.c.b16 %v94, %v93
  %v114 = vpack.c.b16 %v96, %v95
  %v115 = vpack.c.b16 %v98, %v97
  %v116 = vpack.c.b16 %v100, %v99
  %v117 = vpack.c.b16 %v102, %v101
  %v118 = vpack.c.b16 %v104, %v103
  %v119 = vpack.c.b16 %v105, %v105
  %vm133 = vcmask 719872
  %v135 = vsel %vm133, %v50, 0
  %vm137 = vcmask 1043456
  %v139 = vsel %vm137, %v119, 0
  %141 = vmatprep.subr.bf16.mxu0 0
  %142 = vmatpush1.bf16.msra.mxu0 %v106
  %143 = vmatprep.subr.bf16.mxu0 0
  %144 = vmatpush1.bf16.msra.mxu0 %v107
  %145 = vmatprep.subr.bf16.mxu0 0
  %146 = vmatpush1.bf16.msra.mxu0 %v108
  %147 = vmatprep.subr.bf16.mxu0 0
  %148 = vmatpush1.bf16.msra.mxu0 %v109
  %149 = vmatprep.subr.bf16.mxu0 0
  %150 = vmatpush1.bf16.msra.mxu0 %v110
  %151 = vmatprep.subr.bf16.mxu0 0
  %152 = vmatpush1.bf16.msra.mxu0 %v111
  %153 = vmatprep.subr.bf16.mxu0 0
  %154 = vmatpush1.bf16.msra.mxu0 %v112
  %155 = vmatprep.subr.bf16.mxu0 0
  %156 = vmatpush1.bf16.msra.mxu0 %v113
  %157 = vmatprep.subr.bf16.mxu0 0
  %158 = vmatpush1.bf16.msra.mxu0 %v114
  %159 = vmatprep.subr.bf16.mxu0 0
  %160 = vmatpush1.bf16.msra.mxu0 %v115
  %161 = vmatprep.subr.bf16.mxu0 0
  %162 = vmatpush1.bf16.msra.mxu0 %v116
  %163 = vmatprep.subr.bf16.mxu0 0
  %164 = vmatpush1.bf16.msra.mxu0 %v117
  %165 = vmatprep.subr.bf16.mxu0 0
  %166 = vmatpush1.bf16.msra.mxu0 %v118
  %167 = vmatprep.subr.bf16.mxu0 0
  %168 = vmatpush1.bf16.msra.mxu0 %v139
  %169 = vmatprep.subr.bf16.mxu0 0
  %170 = vmatpush1.bf16.msra.mxu0 0
  %171 = vmatprep.subr.bf16.mxu0 0
  %172 = vmatpush1.bf16.msra.mxu0 0
  %173 = vmatprep.mubr.bf16.mxu0 %v135
  %174 = vmatmul.mubr.bf16.gmra.mrb[0].mxu0 %v49
  %v175 = vpop.f32.mrb[0].mxu0
  %v176 = vadd.f32 0.0, %v175
  %v177 = vpop.f32.mrb[0].mxu0
  %v178 = vpop.f32.mrb[0].mxu0
  %v179 = vpop.f32.mrb[0].mxu0
  %180 = vdwg.mxu0
  %vm181 = vcmask 15360
  %v182 = vsel %vm181, %v176, 0.0
  %183 = vadd.xlane.f32.xlu0 %v182
  %v184 = vpop.xlane.xlu0 %183
  %v185 = vrcp.pop 2.0
  %v186 = vmul.f32 %v184, %v185
  %v187 = vsub.f32 %v176, %v186
  %v188 = vmul.f32 %v187, %v187
  %v189 = vsel %vm181, %v188, 0.0
  %190 = vadd.xlane.f32.xlu0 %v189
  %v191 = vpop.xlane.xlu0 %190
  %v192 = vmul.f32 %v191, %v185
  %v193 = vadd.f32 %v192, 1e-05
  %v194 = vrsqrt.pop %v193
  %v195 = vld [vmem:[%s2] sm:$0xff]
  %v196 = vmul.f32 %v194, %v195
  %198 = vset.pattern.permute.xlu0 0
  %199 = vperm.xlu0 %198, %v196
  %v200 = vpop.permute.xlu0 %199
  %v202 = vmul.f32 %v187, %v200
  %v203 = vld [vmem:[%s3] sm:$0xff]
  %205 = vset.pattern.permute.xlu0 0
  %206 = vperm.xlu0 %205, %v203
  %v207 = vpop.permute.xlu0 %206
  %v209 = vadd.f32 %v202, %v207
  %v210 = vmax.f32 %v209, 0.0
  %211 = vst.msk [vmem:[%s4] sm:$0xff] %vm181, %v210
  // Predicated region
  $region18: #{multicubenet_forward.25} parent=0 // pred_check
    _
  $region19: #{multicubenet_forward.25} parent=0 // pred_check_branch
    %213 = sbr.rel (0) target = $region21
  $region20: #{multicubenet_forward.25} parent=0 // pred_region
    _
  $region21: #{multicubenet_forward.25} parent=0 // pred_fallthru
    _
  // Predicated region
  $region22: #{multicubenet_forward.25} parent=0 // pred_check
    _
  $region23: #{multicubenet_forward.25} parent=0 // pred_check_branch
    %215 = sbr.rel (0) target = $region25
  $region24: #{multicubenet_forward.25} parent=0 // pred_region
    _
  $region25: #{multicubenet_forward.25} parent=0 // pred_fallthru
    _

// kernel: multicubenet_forward.21
$region0: #{multicubenet_forward.21}
  #allocation0 [shape = 'u32[]', space=smem, size = 0x4, offset = 0x4, fixed_abs, tag = 'smem constant byte address 0x4 - core index']
  #allocation1 [shape = 'u32[144,128]{1,0:T(1,128)}', space=vmem, size = 0x12000, scoped, tag = 'internal scratch']
  %s0 = inlined_call_operand.vmem [shape: bf16[108,16], index: 0, kind: input, shape index: {}]
  %s1 = inlined_call_operand.vmem [shape: bf16[8,108], index: 1, kind: input, shape index: {}]
  %s2 = inlined_call_operand.vmem [shape: f32[8,1], index: 2, kind: input, shape index: {}]
  %s3 = inlined_call_operand.vmem [shape: f32[8,1], index: 3, kind: input, shape index: {}]
  %s4 = inlined_call_operand.vmem [shape: f32[8,16], index: 4, kind: output, shape index: {}]
  %s5 = sld [smem:[#allocation0]]
  $region26: #{multicubenet_forward.21} parent=0
    _
  %s7 = ssub.s32 1, %s5
  %s8 = scalar_select 0, %s7, %s5
  // Predicated region
  $region2: #{multicubenet_forward.21} parent=0 // pred_check
    _
  $region3: #{multicubenet_forward.21} parent=0 // pred_check_branch
    %10 = sbr.rel (0) target = $region5
  $region4: #{multicubenet_forward.21} parent=0 // pred_region
    _
  $region5: #{multicubenet_forward.21} parent=0 // pred_fallthru
    _
  // Predicated region
  $region6: #{multicubenet_forward.21} parent=0 // pred_check
    _
  $region7: #{multicubenet_forward.21} parent=0 // pred_check_branch
    %12 = sbr.rel (0) target = $region9
  $region8: #{multicubenet_forward.21} parent=0 // pred_region
    _
  $region9: #{multicubenet_forward.21} parent=0 // pred_fallthru
    _
  // Predicated region
  $region10: #{multicubenet_forward.21} parent=0 // pred_check
    _
  $region11: #{multicubenet_forward.21} parent=0 // pred_check_branch
    %14 = sbr.rel (0) target = $region13
  $region12: #{multicubenet_forward.21} parent=0 // pred_region
    _
  $region13: #{multicubenet_forward.21} parent=0 // pred_fallthru
    _
  // Predicated region
  $region14: #{multicubenet_forward.21} parent=0 // pred_check
    _
  $region15: #{multicubenet_forward.21} parent=0 // pred_check_branch
    %16 = sbr.rel (0) target = $region17
  $region16: #{multicubenet_forward.21} parent=0 // pred_region
    _
  $region17: #{multicubenet_forward.21} parent=0 // pred_fallthru
    _
  %v18 = vld [vmem:[%s1] sm:$0xf]
  %v19 = vld [vmem:[%s0] sm:$0xf]
  %v20 = vld [vmem:[%s0 + $0x4] sm:$0xf]
  %v21 = vld [vmem:[%s0 + $0x8] sm:$0xf]
  %v22 = vld [vmem:[%s0 + $0xc] sm:$0xf]
  %v23 = vld [vmem:[%s0 + $0x10] sm:$0xf]
  %v24 = vld [vmem:[%s0 + $0x14] sm:$0xf]
  %v25 = vld [vmem:[%s0 + $0x18] sm:$0xf]
  %v26 = vld [vmem:[%s0 + $0x1c] sm:$0xf]
  %v27 = vld [vmem:[%s0 + $0x20] sm:$0xf]
  %v28 = vld [vmem:[%s0 + $0x24] sm:$0xf]
  %v29 = vld [vmem:[%s0 + $0x28] sm:$0xf]
  %v30 = vld [vmem:[%s0 + $0x2c] sm:$0xf]
  %v31 = vld [vmem:[%s0 + $0x30] sm:$0xf]
  %v32 = vld [vmem:[%s0 + $0x34] sm:$0x3]
  %v47 = vunpack.c.l.b16 %v19
  %v48 = vunpack.c.l.b16 %v20
  %v49 = vunpack.c.l.b16 %v21
  %v50 = vunpack.c.l.b16 %v22
  %v51 = vunpack.c.l.b16 %v23
  %v52 = vunpack.c.l.b16 %v24
  %v53 = vunpack.c.l.b16 %v25
  %v54 = vunpack.c.l.b16 %v26
  %v55 = vunpack.c.l.b16 %v27
  %v56 = vunpack.c.l.b16 %v28
  %v57 = vunpack.c.l.b16 %v29
  %v58 = vunpack.c.l.b16 %v30
  %v59 = vunpack.c.l.b16 %v31
  %v60 = vunpack.c.l.b16 %v32
  %v61 = vpack.c.b16 %v48, %v47
  %v62 = vpack.c.b16 %v50, %v49
  %v63 = vpack.c.b16 %v52, %v51
  %v64 = vpack.c.b16 %v54, %v53
  %v65 = vpack.c.b16 %v56, %v55
  %v66 = vpack.c.b16 %v58, %v57
  %v67 = vpack.c.b16 %v60, %v59
  %vm74 = vcmask 883712
  %v76 = vsel %vm74, %v18, 0
  %vm78 = vcmask 1045504
  %v80 = vsel %vm78, %v67, 0
  %82 = vmatprep.subr.bf16.mxu0 0
  %83 = vmatpush1.bf16.msra.mxu0 %v61
  %84 = vmatprep.subr.bf16.mxu0 0
  %85 = vmatpush1.bf16.msra.mxu0 %v62
  %86 = vmatprep.subr.bf16.mxu0 0
  %87 = vmatpush1.bf16.msra.mxu0 %v63
  %88 = vmatprep.subr.bf16.mxu0 0
  %89 = vmatpush1.bf16.msra.mxu0 %v64
  %90 = vmatprep.subr.bf16.mxu0 0
  %91 = vmatpush1.bf16.msra.mxu0 %v65
  %92 = vmatprep.subr.bf16.mxu0 0
  %93 = vmatpush1.bf16.msra.mxu0 %v66
  %94 = vmatprep.subr.bf16.mxu0 0
  %95 = vmatpush1.bf16.msra.mxu0 %v80
  %96 = vmatprep.subr.bf16.mxu0 0
  %97 = vmatpush1.bf16.msra.mxu0 0
  %98 = vmatprep.subr.bf16.mxu0 0
  %99 = vmatpush1.bf16.msra.mxu0 0
  %100 = vmatprep.subr.bf16.mxu0 0
  %101 = vmatpush1.bf16.msra.mxu0 0
  %102 = vmatprep.subr.bf16.mxu0 0
  %103 = vmatpush1.bf16.msra.mxu0 0
  %104 = vmatprep.subr.bf16.mxu0 0
  %105 = vmatpush1.bf16.msra.mxu0 0
  %106 = vmatprep.subr.bf16.mxu0 0
  %107 = vmatpush1.bf16.msra.mxu0 0
  %108 = vmatprep.subr.bf16.mxu0 0
  %109 = vmatpush1.bf16.msra.mxu0 0
  %110 = vmatprep.subr.bf16.mxu0 0
  %111 = vmatpush1.bf16.msra.mxu0 0
  %112 = vmatprep.subr.bf16.mxu0 0
  %113 = vmatpush1.bf16.msra.mxu0 0
  %114 = vmatprep.mubr.bf16.mxu0 0
  %115 = vmatmul.mubr.bf16.gmra.mrb[0].mxu0 %v76
  %v116 = vpop.f32.mrb[0].mxu0
  %v117 = vadd.f32 0.0, %v116
  %v118 = vpop.f32.mrb[0].mxu0
  %v119 = vpop.f32.mrb[0].mxu0
  %v120 = vpop.f32.mrb[0].mxu0
  %121 = vdwg.mxu0
  %vm122 = vcmask 130048
  %v123 = vsel %vm122, %v117, 0.0
  %124 = vadd.xlane.f32.xlu0 %v123
  %v125 = vpop.xlane.xlu0 %124
  %v126 = vrcp.pop 16.0
  %v127 = vmul.f32 %v125, %v126
  %v128 = vsub.f32 %v117, %v127
  %v129 = vmul.f32 %v128, %v128
  %v130 = vsel %vm122, %v129, 0.0
  %131 = vadd.xlane.f32.xlu0 %v130
  %v132 = vpop.xlane.xlu0 %131
  %v133 = vmul.f32 %v132, %v126
  %v134 = vadd.f32 %v133, 1e-05
  %v135 = vrsqrt.pop %v134
  %v136 = vld [vmem:[%s2] sm:$0xff]
  %v137 = vmul.f32 %v135, %v136
  %139 = vset.pattern.permute.xlu0 0
  %140 = vperm.xlu0 %139, %v137
  %v141 = vpop.permute.xlu0 %140
  %v143 = vmul.f32 %v128, %v141
  %v144 = vld [vmem:[%s3] sm:$0xff]
  %146 = vset.pattern.permute.xlu0 0
  %147 = vperm.xlu0 %146, %v144
  %v148 = vpop.permute.xlu0 %147
  %v150 = vadd.f32 %v143, %v148
  %v151 = vmax.f32 %v150, 0.0
  %152 = vst.msk [vmem:[%s4] sm:$0xff] %vm122, %v151
  // Predicated region
  $region18: #{multicubenet_forward.21} parent=0 // pred_check
    _
  $region19: #{multicubenet_forward.21} parent=0 // pred_check_branch
    %154 = sbr.rel (0) target = $region21
  $region20: #{multicubenet_forward.21} parent=0 // pred_region
    _
  $region21: #{multicubenet_forward.21} parent=0 // pred_fallthru
    _
  // Predicated region
  $region22: #{multicubenet_forward.21} parent=0 // pred_check
    _
  $region23: #{multicubenet_forward.21} parent=0 // pred_check_branch
    %156 = sbr.rel (0) target = $region25
  $region24: #{multicubenet_forward.21} parent=0 // pred_region
    _
  $region25: #{multicubenet_forward.21} parent=0 // pred_fallthru
    _

// kernel: multicubenet_forward.16
$region0: #{multicubenet_forward.16}
  #allocation0 [shape = 'u32[]', space=smem, size = 0x4, offset = 0x4, fixed_abs, tag = 'smem constant byte address 0x4 - core index']
  #allocation1 [shape = 'u32[144,128]{1,0:T(1,128)}', space=vmem, size = 0x12000, scoped, tag = 'internal scratch']
  %s0 = inlined_call_operand.vmem [shape: bf16[108,128], index: 0, kind: input, shape index: {}]
  %s1 = inlined_call_operand.vmem [shape: bf16[4,108], index: 1, kind: input, shape index: {}]
  %s2 = inlined_call_operand.vmem [shape: f32[4,1], index: 2, kind: input, shape index: {}]
  %s3 = inlined_call_operand.vmem [shape: f32[4,1], index: 3, kind: input, shape index: {}]
  %s4 = inlined_call_operand.vmem [shape: f32[4,128], index: 4, kind: output, shape index: {}]
  %s5 = sld [smem:[#allocation0]]
  $region26: #{multicubenet_forward.16} parent=0
    _
  %s7 = ssub.s32 1, %s5
  %s8 = scalar_select 0, %s7, %s5
  // Predicated region
  $region2: #{multicubenet_forward.16} parent=0 // pred_check
    _
  $region3: #{multicubenet_forward.16} parent=0 // pred_check_branch
    %10 = sbr.rel (0) target = $region5
  $region4: #{multicubenet_forward.16} parent=0 // pred_region
    _
  $region5: #{multicubenet_forward.16} parent=0 // pred_fallthru
    _
  // Predicated region
  $region6: #{multicubenet_forward.16} parent=0 // pred_check
    _
  $region7: #{multicubenet_forward.16} parent=0 // pred_check_branch
    %12 = sbr.rel (0) target = $region9
  $region8: #{multicubenet_forward.16} parent=0 // pred_region
    _
  $region9: #{multicubenet_forward.16} parent=0 // pred_fallthru
    _
  // Predicated region
  $region10: #{multicubenet_forward.16} parent=0 // pred_check
    _
  $region11: #{multicubenet_forward.16} parent=0 // pred_check_branch
    %14 = sbr.rel (0) target = $region13
  $region12: #{multicubenet_forward.16} parent=0 // pred_region
    _
  $region13: #{multicubenet_forward.16} parent=0 // pred_fallthru
    _
  // Predicated region
  $region14: #{multicubenet_forward.16} parent=0 // pred_check
    _
  $region15: #{multicubenet_forward.16} parent=0 // pred_check_branch
    %16 = sbr.rel (0) target = $region17
  $region16: #{multicubenet_forward.16} parent=0 // pred_region
    _
  $region17: #{multicubenet_forward.16} parent=0 // pred_fallthru
    _
  %v18 = vld [vmem:[%s1] sm:$0x3]
  %v19 = vld [vmem:[%s0] sm:$0xf]
  %v20 = vld [vmem:[%s0 + $0x4] sm:$0xf]
  %v21 = vld [vmem:[%s0 + $0x8] sm:$0xf]
  %v22 = vld [vmem:[%s0 + $0xc] sm:$0xf]
  %v23 = vld [vmem:[%s0 + $0x10] sm:$0xf]
  %v24 = vld [vmem:[%s0 + $0x14] sm:$0xf]
  %v25 = vld [vmem:[%s0 + $0x18] sm:$0xf]
  %v26 = vld [vmem:[%s0 + $0x1c] sm:$0xf]
  %v27 = vld [vmem:[%s0 + $0x20] sm:$0xf]
  %v28 = vld [vmem:[%s0 + $0x24] sm:$0xf]
  %v29 = vld [vmem:[%s0 + $0x28] sm:$0xf]
  %v30 = vld [vmem:[%s0 + $0x2c] sm:$0xf]
  %v31 = vld [vmem:[%s0 + $0x30] sm:$0xf]
  %v32 = vld [vmem:[%s0 + $0x34] sm:$0x3]
  %v47 = vunpack.c.l.b16 %v19
  %v48 = vunpack.c.l.b16 %v20
  %v49 = vunpack.c.l.b16 %v21
  %v50 = vunpack.c.l.b16 %v22
  %v51 = vunpack.c.l.b16 %v23
  %v52 = vunpack.c.l.b16 %v24
  %v53 = vunpack.c.l.b16 %v25
  %v54 = vunpack.c.l.b16 %v26
  %v55 = vunpack.c.l.b16 %v27
  %v56 = vunpack.c.l.b16 %v28
  %v57 = vunpack.c.l.b16 %v29
  %v58 = vunpack.c.l.b16 %v30
  %v59 = vunpack.c.l.b16 %v31
  %v60 = vunpack.c.l.b16 %v32
  %v61 = vpack.c.b16 %v48, %v47
  %v62 = vpack.c.b16 %v50, %v49
  %v63 = vpack.c.b16 %v52, %v51
  %v64 = vpack.c.b16 %v54, %v53
  %v65 = vpack.c.b16 %v56, %v55
  %v66 = vpack.c.b16 %v58, %v57
  %v67 = vpack.c.b16 %v60, %v59
  %vm74 = vcmask 883712
  %v76 = vsel %vm74, %v18, 0
  %vm78 = vcmask 1045504
  %v80 = vsel %vm78, %v67, 0
  %82 = vmatprep.subr.bf16.mxu0 0
  %83 = vmatpush1.bf16.msra.mxu0 %v61
  %84 = vmatprep.subr.bf16.mxu0 0
  %85 = vmatpush1.bf16.msra.mxu0 %v62
  %86 = vmatprep.subr.bf16.mxu0 0
  %87 = vmatpush1.bf16.msra.mxu0 %v63
  %88 = vmatprep.subr.bf16.mxu0 0
  %89 = vmatpush1.bf16.msra.mxu0 %v64
  %90 = vmatprep.subr.bf16.mxu0 0
  %91 = vmatpush1.bf16.msra.mxu0 %v65
  %92 = vmatprep.subr.bf16.mxu0 0
  %93 = vmatpush1.bf16.msra.mxu0 %v66
  %94 = vmatprep.subr.bf16.mxu0 0
  %95 = vmatpush1.bf16.msra.mxu0 %v80
  %96 = vmatprep.subr.bf16.mxu0 0
  %97 = vmatpush1.bf16.msra.mxu0 0
  %98 = vmatprep.subr.bf16.mxu0 0
  %99 = vmatpush1.bf16.msra.mxu0 0
  %100 = vmatprep.subr.bf16.mxu0 0
  %101 = vmatpush1.bf16.msra.mxu0 0
  %102 = vmatprep.subr.bf16.mxu0 0
  %103 = vmatpush1.bf16.msra.mxu0 0
  %104 = vmatprep.subr.bf16.mxu0 0
  %105 = vmatpush1.bf16.msra.mxu0 0
  %106 = vmatprep.subr.bf16.mxu0 0
  %107 = vmatpush1.bf16.msra.mxu0 0
  %108 = vmatprep.subr.bf16.mxu0 0
  %109 = vmatpush1.bf16.msra.mxu0 0
  %110 = vmatprep.subr.bf16.mxu0 0
  %111 = vmatpush1.bf16.msra.mxu0 0
  %112 = vmatprep.subr.bf16.mxu0 0
  %113 = vmatpush1.bf16.msra.mxu0 0
  %114 = vmatprep.mubr.bf16.mxu0 0
  %115 = vmatmul.mubr.bf16.gmra.mrb[0].mxu0 %v76
  %v116 = vpop.f32.mrb[0].mxu0
  %v117 = vadd.f32 0.0, %v116
  %v118 = vpop.f32.mrb[0].mxu0
  %v119 = vpop.f32.mrb[0].mxu0
  %v120 = vpop.f32.mrb[0].mxu0
  %121 = vdwg.mxu0
  %vm122 = vcmask 1043456
  %v123 = vsel %vm122, %v117, 0.0
  %124 = vadd.xlane.f32.xlu0 %v123
  %v125 = vpop.xlane.xlu0 %124
  %v126 = vrcp.pop 128.0
  %v127 = vmul.f32 %v125, %v126
  %v128 = vsub.f32 %v117, %v127
  %v129 = vmul.f32 %v128, %v128
  %v130 = vsel %vm122, %v129, 0.0
  %131 = vadd.xlane.f32.xlu0 %v130
  %v132 = vpop.xlane.xlu0 %131
  %v133 = vmul.f32 %v132, %v126
  %v134 = vadd.f32 %v133, 1e-05
  %v135 = vrsqrt.pop %v134
  %v136 = vld [vmem:[%s2] sm:$0xf]
  %v137 = vmul.f32 %v135, %v136
  %139 = vset.pattern.permute.xlu0 0
  %140 = vperm.xlu0 %139, %v137
  %v141 = vpop.permute.xlu0 %140
  %v143 = vmul.f32 %v128, %v141
  %v144 = vld [vmem:[%s3] sm:$0xf]
  %146 = vset.pattern.permute.xlu0 0
  %147 = vperm.xlu0 %146, %v144
  %v148 = vpop.permute.xlu0 %147
  %v150 = vadd.f32 %v143, %v148
  %v151 = vmax.f32 %v150, 0.0
  %152 = vst [vmem:[%s4] sm:$0xf] %v151
  // Predicated region
  $region18: #{multicubenet_forward.16} parent=0 // pred_check
    _
  $region19: #{multicubenet_forward.16} parent=0 // pred_check_branch
    %154 = sbr.rel (0) target = $region21
  $region20: #{multicubenet_forward.16} parent=0 // pred_region
    _
  $region21: #{multicubenet_forward.16} parent=0 // pred_fallthru
    _
  // Predicated region
  $region22: #{multicubenet_forward.16} parent=0 // pred_check
    _
  $region23: #{multicubenet_forward.16} parent=0 // pred_check_branch
    %156 = sbr.rel (0) target = $region25
  $region24: #{multicubenet_forward.16} parent=0 // pred_region
    _
  $region25: #{multicubenet_forward.16} parent=0 // pred_fallthru
    _

</llo_original>
